<compile_context>
chip_gen: v5e
topology: v5e:2x2
jax: 0.10.0
libtpu: 0.0.40
codegen_flags: <defaults>
</compile_context>

<pallas_src>
import functools

import jax
import jax.numpy as jnp
from jax import lax
from jax.experimental import pallas as pl
from jax.experimental.pallas import tpu as pltpu


def _se_kernel(x_ref, w1_ref, b1_ref, w2_ref, b2_ref, o_ref, *, use_mxu):
    # --- AdaptiveAvgPool2d(1): mean over spatial (lane axis). ---
    # The (TB, C, HW) value dies right after this reduce; only the tiny
    # (TB, C) pooled vector stays live across the squeeze/excite math, so the
    # big block is never spilled out of / back into VMEM.
    gap = jnp.mean(x_ref[...], axis=2)                           # (TB, C)

    w1 = w1_ref[...]                                             # (Cr, C)
    w2 = w2_ref[...]                                             # (C, Cr)

    if use_mxu:
        # Large C: the 1x1 convs are real contractions -> MXU matmuls.
        y1 = lax.dot_general(gap, w1, (((1,), (1,)), ((), ())),
                             preferred_element_type=jnp.float32) + b1_ref[...]
        y2 = lax.dot_general(y1, w2, (((1,), (1,)), ((), ())),
                             preferred_element_type=jnp.float32)
        y2 = y2[:, :, None] + b2_ref[...]                        # (TB, C, 1)
    else:
        # Tiny C / Cr (this config): VPU broadcast-multiply + lane reduce.
        y1 = jnp.sum(gap[:, None, :] * w1[None, :, :], axis=2) + b1_ref[...]   # (TB, Cr)
        # keepdims lane-reduce -> (TB, C, 1) with C already on sublanes, so the
        # final broadcast against x needs no lane<->sublane relayout.
        y2 = (jnp.sum(y1[:, None, :] * w2[None, :, :], axis=2, keepdims=True)
              + b2_ref[...])                                     # (TB, C, 1)

    # --- ReLU then Sigmoid (matches the module's Sequential ordering). ---
    scale = jax.nn.sigmoid(jnp.maximum(y2, 0.0))                 # (TB, C, 1)

    # --- Re-read x from its VMEM block for the store (plain vld, no spill). ---
    o_ref[...] = x_ref[...] * scale                              # (TB, C, HW)


def _vmem_params():
    """(per-block budget bytes, vmem_limit_bytes) pinned per generation.

    v7x has only 64 MiB physical VMEM, so the defaults are chosen to fit it:
    2x double-buffered input + 2x output blocks ~= 4 * budget <= 24 MiB, under
    a 48 MiB scoped limit. On 128 MiB-VMEM parts (v5e/v6e) we can afford
    bigger blocks and a higher limit.
    """
    phys = None
    try:
        phys = getattr(pltpu.get_tpu_info(), "vmem_capacity_bytes", None)
    except Exception:
        phys = None
    if phys is not None and phys >= (128 << 20):
        return 12 << 20, 96 << 20          # v5e / v6e
    return 6 << 20, 48 << 20               # v7x-safe defaults


def _choose_batch_tile(B, per_batch_bytes, budget_bytes,
                       tiny_bytes=2 << 20):
    """Pick the batch tile TB.

    Tiny inputs run as one grid step (per-step overhead dominates). Otherwise
    pick the largest TB whose block fits `budget_bytes`, divides B evenly, and
    — when splitting — prefers an even number of grid steps so both v7x
    TensorCores get equal work under the "parallel" batch axis.
    """
    total = B * per_batch_bytes
    if total <= tiny_bytes:
        return B

    max_tb = max(1, int(budget_bytes // max(per_batch_bytes, 1)))
    tb = max(1, min(B, max_tb))
    while tb > 1 and B % tb:               # keep the grid evenly divided
        tb -= 1

    steps = B // tb
    if steps > 1 and steps % 2 != 0:       # prefer an even step count (2 TCs)
        t = tb
        while t > 1:
            t -= 1
            if B % t == 0 and (B // t) % 2 == 0:
                tb = t
                break
    return tb


@jax.jit
def squeeze_excitation(x_nchw, w1, b1, w2, b2):
    """x_nchw: (B, C, H, W) float32. Returns (B, C, H, W)."""
    B, C, H, W = x_nchw.shape
    HW = H * W
    Cr = w1.shape[0]

    # HW on lanes (fast axis); lane-dense loads/stores when HW % 128 == 0.
    x_flat = x_nchw.reshape(B, C, HW)
    b1_row = b1.reshape(1, Cr)
    b2_col = b2.reshape(1, C, 1)            # C on sublanes, matching the scale

    budget_bytes, vmem_limit = _vmem_params()
    per_batch_bytes = C * HW * x_flat.dtype.itemsize
    tb = _choose_batch_tile(B, per_batch_bytes, budget_bytes)
    grid = (B // tb,)

    # MXU pays off only when the (TB, Cr, C) broadcast intermediate would get
    # large (late-stage EfficientNet: C ~ 672-1152, Cr ~ 28-48).
    use_mxu = (C * Cr) >= 32 * 1024
    kernel = functools.partial(_se_kernel, use_mxu=use_mxu)

    out_flat = pl.pallas_call(
        kernel,
        out_shape=jax.ShapeDtypeStruct((B, C, HW), x_flat.dtype),
        grid_spec=pltpu.PrefetchScalarGridSpec(
            num_scalar_prefetch=0,
            grid=grid,
            in_specs=[
                pl.BlockSpec((tb, C, HW), lambda b: (b, 0, 0)),
                pl.BlockSpec((Cr, C), lambda b: (0, 0)),
                pl.BlockSpec((1, Cr), lambda b: (0, 0)),
                pl.BlockSpec((C, Cr), lambda b: (0, 0)),
                pl.BlockSpec((1, C, 1), lambda b: (0, 0, 0)),
            ],
            out_specs=pl.BlockSpec((tb, C, HW), lambda b: (b, 0, 0)),
        ),
        compiler_params=pltpu.CompilerParams(
            dimension_semantics=("parallel",),
            vmem_limit_bytes=vmem_limit),
    )(x_flat, w1, b1_row, w2, b2_col)

    return out_flat.reshape(B, C, H, W)


def _reference(x, w1, b1, w2, b2):
    # Pure-JAX reference of the PyTorch forward, for a correctness check.
    gap = jnp.mean(x, axis=(2, 3))                          # (B, C)
    y1 = gap @ w1.T + b1                                    # (B, Cr)
    y2 = y1 @ w2.T + b2                                     # (B, C)
    scale = jax.nn.sigmoid(jnp.maximum(y2, 0.0))            # (B, C)
    return scale[:, :, None, None] * x


if __name__ == "__main__":
    # Module config: channel_count=48, reduction_ratio=24 -> reduced=2 channels.
    B, C, H, W = 4, 48, 16, 16
    Cr = C // 24

    key = jax.random.PRNGKey(0)
    kx, k1, kb1, k2, kb2 = jax.random.split(key, 5)

    x = jax.random.normal(kx, (B, C, H, W), dtype=jnp.float32)
    # Conv2d kernel_size=1 -> weight layout (out_channels, in_channels).
    w1 = 0.1 * jax.random.normal(k1, (Cr, C), dtype=jnp.float32)
    b1 = 0.05 * jax.random.normal(kb1, (Cr,), dtype=jnp.float32)
    w2 = 0.1 * jax.random.normal(k2, (C, Cr), dtype=jnp.float32)
    b2 = 0.05 * jax.random.normal(kb2, (C,), dtype=jnp.float32)

    ref = _reference(x, w1, b1, w2, b2)

    out = squeeze_excitation(x, w1, b1, w2, b2)
    out = jax.block_until_ready(out)

    assert out.shape == (B, C, H, W)
    assert jnp.allclose(out, ref, atol=1e-5, rtol=1e-5)

    print("KERNEL_OK")
</pallas_src>

<mosaic_0001>
module attributes {stable_mosaic.version = 11 : i64} {
  func.func @_se_kernel(%arg0: i32, %arg1: memref<4x48x256xf32, #tpu.memory_space<vmem>>, %arg2: memref<2x48xf32, #tpu.memory_space<vmem>>, %arg3: memref<1x2xf32, #tpu.memory_space<vmem>>, %arg4: memref<48x2xf32, #tpu.memory_space<vmem>>, %arg5: memref<1x48x1xf32, #tpu.memory_space<vmem>>, %arg6: memref<4x48x256xf32, #tpu.memory_space<vmem>>) attributes {dimension_semantics = [#tpu.dimension_semantics<parallel>], iteration_bounds = array<i64: 1>, scalar_prefetch = 0 : i64, scratch_operands = 0 : i64, tpu.core_type = #tpu.core_type<tc>, window_params = [{transform_indices = @transform_0, window_bounds = array<i64: 4, 48, 256>}, {pipeline_mode = #tpu.pipeline_mode<synchronous>, transform_indices = @transform_1, window_bounds = array<i64: 2, 48>}, {pipeline_mode = #tpu.pipeline_mode<synchronous>, transform_indices = @transform_2, window_bounds = array<i64: 1, 2>}, {pipeline_mode = #tpu.pipeline_mode<synchronous>, transform_indices = @transform_3, window_bounds = array<i64: 48, 2>}, {pipeline_mode = #tpu.pipeline_mode<synchronous>, transform_indices = @transform_4, window_bounds = array<i64: 1, 48, 1>}, {transform_indices = @transform_5, window_bounds = array<i64: 4, 48, 256>}]} {
    %c0 = arith.constant 0 : index
    %c0_0 = arith.constant 0 : index
    %c0_1 = arith.constant 0 : index
    %0 = vector.load %arg1[%c0, %c0_0, %c0_1] : memref<4x48x256xf32, #tpu.memory_space<vmem>>, vector<4x48x256xf32>
    %cst = arith.constant dense<0.000000e+00> : vector<4x48xf32>
    %1 = vector.multi_reduction <add>, %0, %cst [2] : vector<4x48x256xf32> to vector<4x48xf32>
    %cst_2 = arith.constant 2.560000e+02 : f32
    %2 = vector.broadcast %cst_2 : f32 to vector<4x48xf32>
    %3 = arith.divf %1, %2 : vector<4x48xf32>
    %c0_3 = arith.constant 0 : index
    %c0_4 = arith.constant 0 : index
    %4 = vector.load %arg2[%c0_3, %c0_4] : memref<2x48xf32, #tpu.memory_space<vmem>>, vector<2x48xf32>
    %c0_5 = arith.constant 0 : index
    %c0_6 = arith.constant 0 : index
    %5 = vector.load %arg4[%c0_5, %c0_6] : memref<48x2xf32, #tpu.memory_space<vmem>>, vector<48x2xf32>
    %6 = vector.shape_cast %3 : vector<4x48xf32> to vector<4x1x48xf32>
    %7 = vector.shape_cast %4 : vector<2x48xf32> to vector<1x2x48xf32>
    %8 = vector.broadcast %6 : vector<4x1x48xf32> to vector<4x2x48xf32>
    %9 = vector.broadcast %7 : vector<1x2x48xf32> to vector<4x2x48xf32>
    %10 = arith.mulf %8, %9 : vector<4x2x48xf32>
    %cst_7 = arith.constant dense<0.000000e+00> : vector<4x2xf32>
    %11 = vector.multi_reduction <add>, %10, %cst_7 [2] : vector<4x2x48xf32> to vector<4x2xf32>
    %c0_8 = arith.constant 0 : index
    %c0_9 = arith.constant 0 : index
    %12 = vector.load %arg3[%c0_8, %c0_9] : memref<1x2xf32, #tpu.memory_space<vmem>>, vector<1x2xf32>
    %13 = vector.broadcast %12 : vector<1x2xf32> to vector<4x2xf32>
    %14 = arith.addf %11, %13 : vector<4x2xf32>
    %15 = vector.shape_cast %14 : vector<4x2xf32> to vector<4x1x2xf32>
    %16 = vector.shape_cast %5 : vector<48x2xf32> to vector<1x48x2xf32>
    %17 = vector.broadcast %15 : vector<4x1x2xf32> to vector<4x48x2xf32>
    %18 = vector.broadcast %16 : vector<1x48x2xf32> to vector<4x48x2xf32>
    %19 = arith.mulf %17, %18 : vector<4x48x2xf32>
    %cst_10 = arith.constant dense<0.000000e+00> : vector<4x48xf32>
    %20 = vector.multi_reduction <add>, %19, %cst_10 [2] : vector<4x48x2xf32> to vector<4x48xf32>
    %21 = vector.shape_cast %20 : vector<4x48xf32> to vector<4x48x1xf32>
    %c0_11 = arith.constant 0 : index
    %c0_12 = arith.constant 0 : index
    %c0_13 = arith.constant 0 : index
    %22 = vector.load %arg5[%c0_11, %c0_12, %c0_13] : memref<1x48x1xf32, #tpu.memory_space<vmem>>, vector<1x48x1xf32>
    %23 = vector.broadcast %22 : vector<1x48x1xf32> to vector<4x48x1xf32>
    %24 = arith.addf %21, %23 : vector<4x48x1xf32>
    %cst_14 = arith.constant 0.000000e+00 : f32
    %25 = vector.broadcast %cst_14 : f32 to vector<4x48x1xf32>
    %26 = arith.maximumf %24, %25 : vector<4x48x1xf32>
    %27 = arith.negf %26 : vector<4x48x1xf32>
    %28 = math.exp %27 : vector<4x48x1xf32>
    %cst_15 = arith.constant 1.000000e+00 : f32
    %29 = vector.broadcast %cst_15 : f32 to vector<4x48x1xf32>
    %30 = arith.addf %29, %28 : vector<4x48x1xf32>
    %31 = arith.divf %29, %30 : vector<4x48x1xf32>
    %c0_16 = arith.constant 0 : index
    %c0_17 = arith.constant 0 : index
    %c0_18 = arith.constant 0 : index
    %32 = vector.load %arg1[%c0_16, %c0_17, %c0_18] : memref<4x48x256xf32, #tpu.memory_space<vmem>>, vector<4x48x256xf32>
    %33 = vector.broadcast %31 : vector<4x48x1xf32> to vector<4x48x256xf32>
    %34 = arith.mulf %32, %33 : vector<4x48x256xf32>
    %c0_19 = arith.constant 0 : index
    %c0_20 = arith.constant 0 : index
    %c0_21 = arith.constant 0 : index
    %35 = vector.load %arg6[%c0_19, %c0_20, %c0_21] : memref<4x48x256xf32, #tpu.memory_space<vmem>>, vector<4x48x256xf32>
    tpu.vector_store %arg6[%c0_19, %c0_20, %c0_21], %34 {strides = array<i32>} : memref<4x48x256xf32, #tpu.memory_space<vmem>>, vector<4x48x256xf32>,
    return
  }
  func.func @transform_0(%arg0: i32) -> (i32, i32, i32) {
    %c0_i32 = arith.constant 0 : i32
    %c0_i32_0 = arith.constant 0 : i32
    %c0_i32_1 = arith.constant 0 : i32
    return %arg0, %c0_i32, %c0_i32_0 : i32, i32, i32
  }
  func.func @transform_1(%arg0: i32) -> (i32, i32) {
    %c0_i32 = arith.constant 0 : i32
    %c0_i32_0 = arith.constant 0 : i32
    %c0_i32_1 = arith.constant 0 : i32
    return %c0_i32, %c0_i32_0 : i32, i32
  }
  func.func @transform_2(%arg0: i32) -> (i32, i32) {
    %c0_i32 = arith.constant 0 : i32
    %c0_i32_0 = arith.constant 0 : i32
    %c0_i32_1 = arith.constant 0 : i32
    return %c0_i32, %c0_i32_0 : i32, i32
  }
  func.func @transform_3(%arg0: i32) -> (i32, i32) {
    %c0_i32 = arith.constant 0 : i32
    %c0_i32_0 = arith.constant 0 : i32
    %c0_i32_1 = arith.constant 0 : i32
    return %c0_i32, %c0_i32_0 : i32, i32
  }
  func.func @transform_4(%arg0: i32) -> (i32, i32, i32) {
    %c0_i32 = arith.constant 0 : i32
    %c0_i32_0 = arith.constant 0 : i32
    %c0_i32_1 = arith.constant 0 : i32
    %c0_i32_2 = arith.constant 0 : i32
    return %c0_i32, %c0_i32_0, %c0_i32_1 : i32, i32, i32
  }
  func.func @transform_5(%arg0: i32) -> (i32, i32, i32) {
    %c0_i32 = arith.constant 0 : i32
    %c0_i32_0 = arith.constant 0 : i32
    %c0_i32_1 = arith.constant 0 : i32
    return %arg0, %c0_i32, %c0_i32_0 : i32, i32, i32
  }
}

</mosaic_0001>

<llo_original>
// kernel: squeeze_excitation.1
$region0: #{squeeze_excitation.1}
  #allocation0 [shape = 'u32[]', space=smem, size = 0x4, offset = 0x4, fixed_abs, tag = 'smem constant byte address 0x4 - core index']
  #allocation1 [shape = 'u32[72,128]{1,0:T(1,128)}', space=vmem, size = 0x9000, scoped, tag = 'internal scratch']
  %s0 = inlined_call_operand.vmem [shape: f32[4,48,256], index: 0, kind: input, shape index: {}]
  %s1 = inlined_call_operand.vmem [shape: f32[2,48], index: 1, kind: input, shape index: {}]
  %s2 = inlined_call_operand.vmem [shape: f32[1,2], index: 2, kind: input, shape index: {}]
  %s3 = inlined_call_operand.vmem [shape: f32[48,2], index: 3, kind: input, shape index: {}]
  %s4 = inlined_call_operand.vmem [shape: f32[1,48,1], index: 4, kind: input, shape index: {}]
  %s5 = inlined_call_operand.vmem [shape: f32[4,48,256], index: 5, kind: output, shape index: {}]
  %s6 = sld [smem:[#allocation0]]
  $region30: #{squeeze_excitation.1} parent=0
    _
  %s8 = ssub.s32 1, %s6
  %s9 = scalar_select 0, %s8, %s6
  // Predicated region
  $region2: #{squeeze_excitation.1} parent=0 // pred_check
    _
  $region3: #{squeeze_excitation.1} parent=0 // pred_check_branch
    %11 = sbr.rel (0) target = $region5
  $region4: #{squeeze_excitation.1} parent=0 // pred_region
    _
  $region5: #{squeeze_excitation.1} parent=0 // pred_fallthru
    _
  // Predicated region
  $region6: #{squeeze_excitation.1} parent=0 // pred_check
    _
  $region7: #{squeeze_excitation.1} parent=0 // pred_check_branch
    %13 = sbr.rel (0) target = $region9
  $region8: #{squeeze_excitation.1} parent=0 // pred_region
    _
  $region9: #{squeeze_excitation.1} parent=0 // pred_fallthru
    _
  // Predicated region
  $region10: #{squeeze_excitation.1} parent=0 // pred_check
    _
  $region11: #{squeeze_excitation.1} parent=0 // pred_check_branch
    %15 = sbr.rel (0) target = $region13
  $region12: #{squeeze_excitation.1} parent=0 // pred_region
    _
  $region13: #{squeeze_excitation.1} parent=0 // pred_fallthru
    _
  // Predicated region
  $region14: #{squeeze_excitation.1} parent=0 // pred_check
    _
  $region15: #{squeeze_excitation.1} parent=0 // pred_check_branch
    %17 = sbr.rel (0) target = $region17
  $region16: #{squeeze_excitation.1} parent=0 // pred_region
    _
  $region17: #{squeeze_excitation.1} parent=0 // pred_fallthru
    _
  // Predicated region
  $region18: #{squeeze_excitation.1} parent=0 // pred_check
    _
  $region19: #{squeeze_excitation.1} parent=0 // pred_check_branch
    %19 = sbr.rel (0) target = $region21
  $region20: #{squeeze_excitation.1} parent=0 // pred_region
    _
  $region21: #{squeeze_excitation.1} parent=0 // pred_fallthru
    _
  %v20 = vld [vmem:[%s0] sm:$0xff]
  %v21 = vld [vmem:[%s0 + $0x8] sm:$0xff]
  %v22 = vld [vmem:[%s0 + $0x10] sm:$0xff]
  %v23 = vld [vmem:[%s0 + $0x18] sm:$0xff]
  %v24 = vld [vmem:[%s0 + $0x20] sm:$0xff]
  %v25 = vld [vmem:[%s0 + $0x28] sm:$0xff]
  %v26 = vld [vmem:[%s0 + $0x30] sm:$0xff]
  %v27 = vld [vmem:[%s0 + $0x38] sm:$0xff]
  %v28 = vld [vmem:[%s0 + $0x40] sm:$0xff]
  %v29 = vld [vmem:[%s0 + $0x48] sm:$0xff]
  %v30 = vld [vmem:[%s0 + $0x50] sm:$0xff]
  %v31 = vld [vmem:[%s0 + $0x58] sm:$0xff]
  %v32 = vld [vmem:[%s0 + $0x60] sm:$0xff]
  %v33 = vld [vmem:[%s0 + $0x68] sm:$0xff]
  %v34 = vld [vmem:[%s0 + $0x70] sm:$0xff]
  %v35 = vld [vmem:[%s0 + $0x78] sm:$0xff]
  %v36 = vld [vmem:[%s0 + $0x80] sm:$0xff]
  %v37 = vld [vmem:[%s0 + $0x88] sm:$0xff]
  %v38 = vld [vmem:[%s0 + $0x90] sm:$0xff]
  %v39 = vld [vmem:[%s0 + $0x98] sm:$0xff]
  %v40 = vld [vmem:[%s0 + $0xa0] sm:$0xff]
  %v41 = vld [vmem:[%s0 + $0xa8] sm:$0xff]
  %v42 = vld [vmem:[%s0 + $0xb0] sm:$0xff]
  %v43 = vld [vmem:[%s0 + $0xb8] sm:$0xff]
  %v44 = vld [vmem:[%s0 + $0xc0] sm:$0xff]
  %v45 = vld [vmem:[%s0 + $0xc8] sm:$0xff]
  %v46 = vld [vmem:[%s0 + $0xd0] sm:$0xff]
  %v47 = vld [vmem:[%s0 + $0xd8] sm:$0xff]
  %v48 = vld [vmem:[%s0 + $0xe0] sm:$0xff]
  %v49 = vld [vmem:[%s0 + $0xe8] sm:$0xff]
  %v50 = vld [vmem:[%s0 + $0xf0] sm:$0xff]
  %v51 = vld [vmem:[%s0 + $0xf8] sm:$0xff]
  %v52 = vld [vmem:[%s0 + $0x100] sm:$0xff]
  %v53 = vld [vmem:[%s0 + $0x108] sm:$0xff]
  %v54 = vld [vmem:[%s0 + $0x110] sm:$0xff]
  %v55 = vld [vmem:[%s0 + $0x118] sm:$0xff]
  %v56 = vld [vmem:[%s0 + $0x120] sm:$0xff]
  %v57 = vld [vmem:[%s0 + $0x128] sm:$0xff]
  %v58 = vld [vmem:[%s0 + $0x130] sm:$0xff]
  %v59 = vld [vmem:[%s0 + $0x138] sm:$0xff]
  %v60 = vld [vmem:[%s0 + $0x140] sm:$0xff]
  %v61 = vld [vmem:[%s0 + $0x148] sm:$0xff]
  %v62 = vld [vmem:[%s0 + $0x150] sm:$0xff]
  %v63 = vld [vmem:[%s0 + $0x158] sm:$0xff]
  %v64 = vld [vmem:[%s0 + $0x160] sm:$0xff]
  %v65 = vld [vmem:[%s0 + $0x168] sm:$0xff]
  %v66 = vld [vmem:[%s0 + $0x170] sm:$0xff]
  %v67 = vld [vmem:[%s0 + $0x178] sm:$0xff]
  %v68 = vadd.f32 %v20, %v21
  %69 = vadd.xlane.f32.xlu0 %v68
  %v70 = vpop.xlane.xlu0 %69
  %v71 = vadd.f32 %v22, %v23
  %72 = vadd.xlane.f32.xlu0 %v71
  %v73 = vpop.xlane.xlu0 %72
  %v74 = vadd.f32 %v24, %v25
  %75 = vadd.xlane.f32.xlu0 %v74
  %v76 = vpop.xlane.xlu0 %75
  %v77 = vadd.f32 %v26, %v27
  %78 = vadd.xlane.f32.xlu0 %v77
  %v79 = vpop.xlane.xlu0 %78
  %v80 = vadd.f32 %v28, %v29
  %81 = vadd.xlane.f32.xlu0 %v80
  %v82 = vpop.xlane.xlu0 %81
  %v83 = vadd.f32 %v30, %v31
  %84 = vadd.xlane.f32.xlu0 %v83
  %v85 = vpop.xlane.xlu0 %84
  %v86 = vadd.f32 %v32, %v33
  %87 = vadd.xlane.f32.xlu0 %v86
  %v88 = vpop.xlane.xlu0 %87
  %v89 = vadd.f32 %v34, %v35
  %90 = vadd.xlane.f32.xlu0 %v89
  %v91 = vpop.xlane.xlu0 %90
  %v92 = vadd.f32 %v36, %v37
  %93 = vadd.xlane.f32.xlu0 %v92
  %v94 = vpop.xlane.xlu0 %93
  %v95 = vadd.f32 %v38, %v39
  %96 = vadd.xlane.f32.xlu0 %v95
  %v97 = vpop.xlane.xlu0 %96
  %v98 = vadd.f32 %v40, %v41
  %99 = vadd.xlane.f32.xlu0 %v98
  %v100 = vpop.xlane.xlu0 %99
  %v101 = vadd.f32 %v42, %v43
  %102 = vadd.xlane.f32.xlu0 %v101
  %v103 = vpop.xlane.xlu0 %102
  %v104 = vadd.f32 %v44, %v45
  %105 = vadd.xlane.f32.xlu0 %v104
  %v106 = vpop.xlane.xlu0 %105
  %v107 = vadd.f32 %v46, %v47
  %108 = vadd.xlane.f32.xlu0 %v107
  %v109 = vpop.xlane.xlu0 %108
  %v110 = vadd.f32 %v48, %v49
  %111 = vadd.xlane.f32.xlu0 %v110
  %v112 = vpop.xlane.xlu0 %111
  %v113 = vadd.f32 %v50, %v51
  %114 = vadd.xlane.f32.xlu0 %v113
  %v115 = vpop.xlane.xlu0 %114
  %v116 = vadd.f32 %v52, %v53
  %117 = vadd.xlane.f32.xlu0 %v116
  %v118 = vpop.xlane.xlu0 %117
  %v119 = vadd.f32 %v54, %v55
  %120 = vadd.xlane.f32.xlu0 %v119
  %v121 = vpop.xlane.xlu0 %120
  %v122 = vadd.f32 %v56, %v57
  %123 = vadd.xlane.f32.xlu0 %v122
  %v124 = vpop.xlane.xlu0 %123
  %v125 = vadd.f32 %v58, %v59
  %126 = vadd.xlane.f32.xlu0 %v125
  %v127 = vpop.xlane.xlu0 %126
  %v128 = vadd.f32 %v60, %v61
  %129 = vadd.xlane.f32.xlu0 %v128
  %v130 = vpop.xlane.xlu0 %129
  %v131 = vadd.f32 %v62, %v63
  %132 = vadd.xlane.f32.xlu0 %v131
  %v133 = vpop.xlane.xlu0 %132
  %v134 = vadd.f32 %v64, %v65
  %135 = vadd.xlane.f32.xlu0 %v134
  %v136 = vpop.xlane.xlu0 %135
  %v137 = vadd.f32 %v66, %v67
  %138 = vadd.xlane.f32.xlu0 %v137
  %v139 = vpop.xlane.xlu0 %138
  %v140 = vrcp.pop 256.0
  %v141 = vmul.f32 256.0, %v140
  %v142 = vsub.f32 1.0, %v141
  %v143 = vmul.f32 %v140, %v142
  %v144 = vadd.f32 %v140, %v143
  %vm145 = vweird.f32 %v140
  %v146 = vsel %vm145, %v140, %v144
  %v147 = vmul.f32 %v70, %v146
  %v148 = vmul.f32 %v73, %v146
  %v149 = vmul.f32 %v76, %v146
  %v150 = vmul.f32 %v79, %v146
  %v151 = vmul.f32 %v82, %v146
  %v152 = vmul.f32 %v85, %v146
  %v153 = vmul.f32 %v88, %v146
  %v154 = vmul.f32 %v91, %v146
  %v155 = vmul.f32 %v94, %v146
  %v156 = vmul.f32 %v97, %v146
  %v157 = vmul.f32 %v100, %v146
  %v158 = vmul.f32 %v103, %v146
  %v159 = vmul.f32 %v106, %v146
  %v160 = vmul.f32 %v109, %v146
  %v161 = vmul.f32 %v112, %v146
  %v162 = vmul.f32 %v115, %v146
  %v163 = vmul.f32 %v118, %v146
  %v164 = vmul.f32 %v121, %v146
  %v165 = vmul.f32 %v124, %v146
  %v166 = vmul.f32 %v127, %v146
  %v167 = vmul.f32 %v130, %v146
  %v168 = vmul.f32 %v133, %v146
  %v169 = vmul.f32 %v136, %v146
  %v170 = vmul.f32 %v139, %v146
  %v171 = vld [vmem:[%s1] sm:$0x3]
  %v172 = vld [vmem:[%s3] sm:$0xff]
  %v173 = vld [vmem:[%s3 + $0x8] sm:$0xff]
  %v174 = vld [vmem:[%s3 + $0x10] sm:$0xff]
  %v175 = vld [vmem:[%s3 + $0x18] sm:$0xff]
  %v176 = vld [vmem:[%s3 + $0x20] sm:$0xff]
  %v177 = vld [vmem:[%s3 + $0x28] sm:$0xff]
  %v179 = vperm.slane %v171, 0
  %v180 = vlaneseq
  %v181 = vshrl.u32 %v180, 7
  %183 = vset.pattern.permute.xlu0 %v181
  %184 = vperm.xlu0 %183, %v179
  %v185 = vpop.permute.xlu0 %184
  %v186 = vlaneseq
  %v187 = vshrl.u32 %v186, 7
  %v188 = vadd.s32 %v187, 8
  %189 = vset.pattern.permute.xlu0 %v188
  %190 = vperm.xlu0 %189, %v179
  %v191 = vpop.permute.xlu0 %190
  %v192 = vlaneseq
  %v193 = vshrl.u32 %v192, 7
  %v194 = vadd.s32 %v193, 16
  %195 = vset.pattern.permute.xlu0 %v194
  %196 = vperm.xlu0 %195, %v179
  %v197 = vpop.permute.xlu0 %196
  %v198 = vlaneseq
  %v199 = vshrl.u32 %v198, 7
  %v200 = vadd.s32 %v199, 24
  %201 = vset.pattern.permute.xlu0 %v200
  %202 = vperm.xlu0 %201, %v179
  %v203 = vpop.permute.xlu0 %202
  %v204 = vlaneseq
  %v205 = vshrl.u32 %v204, 7
  %v206 = vadd.s32 %v205, 32
  %207 = vset.pattern.permute.xlu0 %v206
  %208 = vperm.xlu0 %207, %v179
  %v209 = vpop.permute.xlu0 %208
  %v210 = vlaneseq
  %v211 = vshrl.u32 %v210, 7
  %v212 = vadd.s32 %v211, 40
  %213 = vset.pattern.permute.xlu0 %v212
  %214 = vperm.xlu0 %213, %v179
  %v215 = vpop.permute.xlu0 %214
  %v216 = vperm.slane %v171, 1
  %v217 = vlaneseq
  %v218 = vshrl.u32 %v217, 7
  %220 = vset.pattern.permute.xlu0 %v218
  %221 = vperm.xlu0 %220, %v216
  %v222 = vpop.permute.xlu0 %221
  %v223 = vlaneseq
  %v224 = vshrl.u32 %v223, 7
  %v225 = vadd.s32 %v224, 8
  %226 = vset.pattern.permute.xlu0 %v225
  %227 = vperm.xlu0 %226, %v216
  %v228 = vpop.permute.xlu0 %227
  %v229 = vlaneseq
  %v230 = vshrl.u32 %v229, 7
  %v231 = vadd.s32 %v230, 16
  %232 = vset.pattern.permute.xlu0 %v231
  %233 = vperm.xlu0 %232, %v216
  %v234 = vpop.permute.xlu0 %233
  %v235 = vlaneseq
  %v236 = vshrl.u32 %v235, 7
  %v237 = vadd.s32 %v236, 24
  %238 = vset.pattern.permute.xlu0 %v237
  %239 = vperm.xlu0 %238, %v216
  %v240 = vpop.permute.xlu0 %239
  %v241 = vlaneseq
  %v242 = vshrl.u32 %v241, 7
  %v243 = vadd.s32 %v242, 32
  %244 = vset.pattern.permute.xlu0 %v243
  %245 = vperm.xlu0 %244, %v216
  %v246 = vpop.permute.xlu0 %245
  %v247 = vlaneseq
  %v248 = vshrl.u32 %v247, 7
  %v249 = vadd.s32 %v248, 40
  %250 = vset.pattern.permute.xlu0 %v249
  %251 = vperm.xlu0 %250, %v216
  %v252 = vpop.permute.xlu0 %251
  %v265 = vmul.f32 %v147, %v185
  %v266 = vmul.f32 %v148, %v191
  %v267 = vmul.f32 %v149, %v197
  %v268 = vmul.f32 %v150, %v203
  %v269 = vmul.f32 %v151, %v209
  %v270 = vmul.f32 %v152, %v215
  %v271 = vmul.f32 %v147, %v222
  %v272 = vmul.f32 %v148, %v228
  %v273 = vmul.f32 %v149, %v234
  %v274 = vmul.f32 %v150, %v240
  %v275 = vmul.f32 %v151, %v246
  %v276 = vmul.f32 %v152, %v252
  %v277 = vmul.f32 %v153, %v185
  %v278 = vmul.f32 %v154, %v191
  %v279 = vmul.f32 %v155, %v197
  %v280 = vmul.f32 %v156, %v203
  %v281 = vmul.f32 %v157, %v209
  %v282 = vmul.f32 %v158, %v215
  %v283 = vmul.f32 %v153, %v222
  %v284 = vmul.f32 %v154, %v228
  %v285 = vmul.f32 %v155, %v234
  %v286 = vmul.f32 %v156, %v240
  %v287 = vmul.f32 %v157, %v246
  %v288 = vmul.f32 %v158, %v252
  %v289 = vmul.f32 %v159, %v185
  %v290 = vmul.f32 %v160, %v191
  %v291 = vmul.f32 %v161, %v197
  %v292 = vmul.f32 %v162, %v203
  %v293 = vmul.f32 %v163, %v209
  %v294 = vmul.f32 %v164, %v215
  %v295 = vmul.f32 %v159, %v222
  %v296 = vmul.f32 %v160, %v228
  %v297 = vmul.f32 %v161, %v234
  %v298 = vmul.f32 %v162, %v240
  %v299 = vmul.f32 %v163, %v246
  %v300 = vmul.f32 %v164, %v252
  %v301 = vmul.f32 %v165, %v185
  %v302 = vmul.f32 %v166, %v191
  %v303 = vmul.f32 %v167, %v197
  %v304 = vmul.f32 %v168, %v203
  %v305 = vmul.f32 %v169, %v209
  %v306 = vmul.f32 %v170, %v215
  %v307 = vmul.f32 %v165, %v222
  %v308 = vmul.f32 %v166, %v228
  %v309 = vmul.f32 %v167, %v234
  %v310 = vmul.f32 %v168, %v240
  %v311 = vmul.f32 %v169, %v246
  %v312 = vmul.f32 %v170, %v252
  %361 = vset.pattern.permute.xlu0 0
  %362 = vperm.xlu0 %361, %v265
  %v363 = vpop.permute.xlu0 %362
  %364 = vset.pattern.permute.xlu0 0
  %365 = vperm.xlu0 %364, %v266
  %v366 = vpop.permute.xlu0 %365
  %367 = vset.pattern.permute.xlu0 0
  %368 = vperm.xlu0 %367, %v267
  %v369 = vpop.permute.xlu0 %368
  %370 = vset.pattern.permute.xlu0 0
  %371 = vperm.xlu0 %370, %v268
  %v372 = vpop.permute.xlu0 %371
  %373 = vset.pattern.permute.xlu0 0
  %374 = vperm.xlu0 %373, %v269
  %v375 = vpop.permute.xlu0 %374
  %376 = vset.pattern.permute.xlu0 0
  %377 = vperm.xlu0 %376, %v270
  %v378 = vpop.permute.xlu0 %377
  %379 = vset.pattern.permute.xlu0 0
  %380 = vperm.xlu0 %379, %v271
  %v381 = vpop.permute.xlu0 %380
  %382 = vset.pattern.permute.xlu0 0
  %383 = vperm.xlu0 %382, %v272
  %v384 = vpop.permute.xlu0 %383
  %385 = vset.pattern.permute.xlu0 0
  %386 = vperm.xlu0 %385, %v273
  %v387 = vpop.permute.xlu0 %386
  %388 = vset.pattern.permute.xlu0 0
  %389 = vperm.xlu0 %388, %v274
  %v390 = vpop.permute.xlu0 %389
  %391 = vset.pattern.permute.xlu0 0
  %392 = vperm.xlu0 %391, %v275
  %v393 = vpop.permute.xlu0 %392
  %394 = vset.pattern.permute.xlu0 0
  %395 = vperm.xlu0 %394, %v276
  %v396 = vpop.permute.xlu0 %395
  %397 = vset.pattern.permute.xlu0 0
  %398 = vperm.xlu0 %397, %v277
  %v399 = vpop.permute.xlu0 %398
  %400 = vset.pattern.permute.xlu0 0
  %401 = vperm.xlu0 %400, %v278
  %v402 = vpop.permute.xlu0 %401
  %403 = vset.pattern.permute.xlu0 0
  %404 = vperm.xlu0 %403, %v279
  %v405 = vpop.permute.xlu0 %404
  %406 = vset.pattern.permute.xlu0 0
  %407 = vperm.xlu0 %406, %v280
  %v408 = vpop.permute.xlu0 %407
  %409 = vset.pattern.permute.xlu0 0
  %410 = vperm.xlu0 %409, %v281
  %v411 = vpop.permute.xlu0 %410
  %412 = vset.pattern.permute.xlu0 0
  %413 = vperm.xlu0 %412, %v282
  %v414 = vpop.permute.xlu0 %413
  %415 = vset.pattern.permute.xlu0 0
  %416 = vperm.xlu0 %415, %v283
  %v417 = vpop.permute.xlu0 %416
  %418 = vset.pattern.permute.xlu0 0
  %419 = vperm.xlu0 %418, %v284
  %v420 = vpop.permute.xlu0 %419
  %421 = vset.pattern.permute.xlu0 0
  %422 = vperm.xlu0 %421, %v285
  %v423 = vpop.permute.xlu0 %422
  %424 = vset.pattern.permute.xlu0 0
  %425 = vperm.xlu0 %424, %v286
  %v426 = vpop.permute.xlu0 %425
  %427 = vset.pattern.permute.xlu0 0
  %428 = vperm.xlu0 %427, %v287
  %v429 = vpop.permute.xlu0 %428
  %430 = vset.pattern.permute.xlu0 0
  %431 = vperm.xlu0 %430, %v288
  %v432 = vpop.permute.xlu0 %431
  %433 = vset.pattern.permute.xlu0 0
  %434 = vperm.xlu0 %433, %v289
  %v435 = vpop.permute.xlu0 %434
  %436 = vset.pattern.permute.xlu0 0
  %437 = vperm.xlu0 %436, %v290
  %v438 = vpop.permute.xlu0 %437
  %439 = vset.pattern.permute.xlu0 0
  %440 = vperm.xlu0 %439, %v291
  %v441 = vpop.permute.xlu0 %440
  %442 = vset.pattern.permute.xlu0 0
  %443 = vperm.xlu0 %442, %v292
  %v444 = vpop.permute.xlu0 %443
  %445 = vset.pattern.permute.xlu0 0
  %446 = vperm.xlu0 %445, %v293
  %v447 = vpop.permute.xlu0 %446
  %448 = vset.pattern.permute.xlu0 0
  %449 = vperm.xlu0 %448, %v294
  %v450 = vpop.permute.xlu0 %449
  %451 = vset.pattern.permute.xlu0 0
  %452 = vperm.xlu0 %451, %v295
  %v453 = vpop.permute.xlu0 %452
  %454 = vset.pattern.permute.xlu0 0
  %455 = vperm.xlu0 %454, %v296
  %v456 = vpop.permute.xlu0 %455
  %457 = vset.pattern.permute.xlu0 0
  %458 = vperm.xlu0 %457, %v297
  %v459 = vpop.permute.xlu0 %458
  %460 = vset.pattern.permute.xlu0 0
  %461 = vperm.xlu0 %460, %v298
  %v462 = vpop.permute.xlu0 %461
  %463 = vset.pattern.permute.xlu0 0
  %464 = vperm.xlu0 %463, %v299
  %v465 = vpop.permute.xlu0 %464
  %466 = vset.pattern.permute.xlu0 0
  %467 = vperm.xlu0 %466, %v300
  %v468 = vpop.permute.xlu0 %467
  %469 = vset.pattern.permute.xlu0 0
  %470 = vperm.xlu0 %469, %v301
  %v471 = vpop.permute.xlu0 %470
  %472 = vset.pattern.permute.xlu0 0
  %473 = vperm.xlu0 %472, %v302
  %v474 = vpop.permute.xlu0 %473
  %475 = vset.pattern.permute.xlu0 0
  %476 = vperm.xlu0 %475, %v303
  %v477 = vpop.permute.xlu0 %476
  %478 = vset.pattern.permute.xlu0 0
  %479 = vperm.xlu0 %478, %v304
  %v480 = vpop.permute.xlu0 %479
  %481 = vset.pattern.permute.xlu0 0
  %482 = vperm.xlu0 %481, %v305
  %v483 = vpop.permute.xlu0 %482
  %484 = vset.pattern.permute.xlu0 0
  %485 = vperm.xlu0 %484, %v306
  %v486 = vpop.permute.xlu0 %485
  %487 = vset.pattern.permute.xlu0 0
  %488 = vperm.xlu0 %487, %v307
  %v489 = vpop.permute.xlu0 %488
  %490 = vset.pattern.permute.xlu0 0
  %491 = vperm.xlu0 %490, %v308
  %v492 = vpop.permute.xlu0 %491
  %493 = vset.pattern.permute.xlu0 0
  %494 = vperm.xlu0 %493, %v309
  %v495 = vpop.permute.xlu0 %494
  %496 = vset.pattern.permute.xlu0 0
  %497 = vperm.xlu0 %496, %v310
  %v498 = vpop.permute.xlu0 %497
  %499 = vset.pattern.permute.xlu0 0
  %500 = vperm.xlu0 %499, %v311
  %v501 = vpop.permute.xlu0 %500
  %502 = vset.pattern.permute.xlu0 0
  %503 = vperm.xlu0 %502, %v312
  %v504 = vpop.permute.xlu0 %503
  %v505 = vlaneseq
  %v506 = vand.u32 %v505, 127
  %v507 = vperm.slane %v363, %v506
  %v508 = vadd.s32 %v506, 4294967288
  %v509 = vperm.slane %v366, %v508
  %vm510 = vcmask 130112
  %v511 = vsel %vm510, %v509, %v507
  %v512 = vadd.s32 %v506, 4294967280
  %v513 = vperm.slane %v369, %v512
  %vm514 = vcmask 195712
  %v515 = vsel %vm514, %v513, %v511
  %v516 = vadd.s32 %v506, 4294967272
  %v517 = vperm.slane %v372, %v516
  %vm518 = vcmask 261312
  %v519 = vsel %vm518, %v517, %v515
  %v520 = vadd.s32 %v506, 4294967264
  %v521 = vperm.slane %v375, %v520
  %vm522 = vcmask 326912
  %v523 = vsel %vm522, %v521, %v519
  %v524 = vadd.s32 %v506, 4294967256
  %v525 = vperm.slane %v378, %v524
  %vm526 = vcmask 392512
  %v527 = vsel %vm526, %v525, %v523
  %v528 = vperm.slane %v381, %v506
  %v529 = vperm.slane %v384, %v508
  %v530 = vsel %vm510, %v529, %v528
  %v531 = vperm.slane %v387, %v512
  %v532 = vsel %vm514, %v531, %v530
  %v533 = vperm.slane %v390, %v516
  %v534 = vsel %vm518, %v533, %v532
  %v535 = vperm.slane %v393, %v520
  %v536 = vsel %vm522, %v535, %v534
  %v537 = vperm.slane %v396, %v524
  %v538 = vsel %vm526, %v537, %v536
  %v539 = vperm.slane %v399, %v506
  %v540 = vperm.slane %v402, %v508
  %v541 = vsel %vm510, %v540, %v539
  %v542 = vperm.slane %v405, %v512
  %v543 = vsel %vm514, %v542, %v541
  %v544 = vperm.slane %v408, %v516
  %v545 = vsel %vm518, %v544, %v543
  %v546 = vperm.slane %v411, %v520
  %v547 = vsel %vm522, %v546, %v545
  %v548 = vperm.slane %v414, %v524
  %v549 = vsel %vm526, %v548, %v547
  %v550 = vperm.slane %v417, %v506
  %v551 = vperm.slane %v420, %v508
  %v552 = vsel %vm510, %v551, %v550
  %v553 = vperm.slane %v423, %v512
  %v554 = vsel %vm514, %v553, %v552
  %v555 = vperm.slane %v426, %v516
  %v556 = vsel %vm518, %v555, %v554
  %v557 = vperm.slane %v429, %v520
  %v558 = vsel %vm522, %v557, %v556
  %v559 = vperm.slane %v432, %v524
  %v560 = vsel %vm526, %v559, %v558
  %v561 = vperm.slane %v435, %v506
  %v562 = vperm.slane %v438, %v508
  %v563 = vsel %vm510, %v562, %v561
  %v564 = vperm.slane %v441, %v512
  %v565 = vsel %vm514, %v564, %v563
  %v566 = vperm.slane %v444, %v516
  %v567 = vsel %vm518, %v566, %v565
  %v568 = vperm.slane %v447, %v520
  %v569 = vsel %vm522, %v568, %v567
  %v570 = vperm.slane %v450, %v524
  %v571 = vsel %vm526, %v570, %v569
  %v572 = vperm.slane %v453, %v506
  %v573 = vperm.slane %v456, %v508
  %v574 = vsel %vm510, %v573, %v572
  %v575 = vperm.slane %v459, %v512
  %v576 = vsel %vm514, %v575, %v574
  %v577 = vperm.slane %v462, %v516
  %v578 = vsel %vm518, %v577, %v576
  %v579 = vperm.slane %v465, %v520
  %v580 = vsel %vm522, %v579, %v578
  %v581 = vperm.slane %v468, %v524
  %v582 = vsel %vm526, %v581, %v580
  %v583 = vperm.slane %v471, %v506
  %v584 = vperm.slane %v474, %v508
  %v585 = vsel %vm510, %v584, %v583
  %v586 = vperm.slane %v477, %v512
  %v587 = vsel %vm514, %v586, %v585
  %v588 = vperm.slane %v480, %v516
  %v589 = vsel %vm518, %v588, %v587
  %v590 = vperm.slane %v483, %v520
  %v591 = vsel %vm522, %v590, %v589
  %v592 = vperm.slane %v486, %v524
  %v593 = vsel %vm526, %v592, %v591
  %v594 = vperm.slane %v489, %v506
  %v595 = vperm.slane %v492, %v508
  %v596 = vsel %vm510, %v595, %v594
  %v597 = vperm.slane %v495, %v512
  %v598 = vsel %vm514, %v597, %v596
  %v599 = vperm.slane %v498, %v516
  %v600 = vsel %vm518, %v599, %v598
  %v601 = vperm.slane %v501, %v520
  %v602 = vsel %vm522, %v601, %v600
  %v603 = vperm.slane %v504, %v524
  %v604 = vsel %vm526, %v603, %v602
  %vm605 = vcmask 1041409
  %v606 = vsel %vm605, %v538, %v527
  %v607 = vsel %vm605, %v560, %v549
  %v608 = vsel %vm605, %v582, %v571
  %v609 = vsel %vm605, %v604, %v593
  %vm614 = vcmask 386048
  %v615 = vsel %vm614, %v606, 0.0
  %616 = vadd.xlane.f32.xlu0 %v615
  %v617 = vpop.xlane.xlu0 %616
  %v618 = vsel %vm614, %v607, 0.0
  %619 = vadd.xlane.f32.xlu0 %v618
  %v620 = vpop.xlane.xlu0 %619
  %v621 = vsel %vm614, %v608, 0.0
  %622 = vadd.xlane.f32.xlu0 %v621
  %v623 = vpop.xlane.xlu0 %622
  %v624 = vsel %vm614, %v609, 0.0
  %625 = vadd.xlane.f32.xlu0 %v624
  %v626 = vpop.xlane.xlu0 %625
  %v627 = vld [vmem:[%s2] sm:$0x1]
  %v629 = vperm.slane %v627, 0
  %v630 = vlaneseq
  %v631 = vshrl.u32 %v630, 7
  %633 = vset.pattern.permute.xlu0 %v631
  %634 = vperm.xlu0 %633, %v629
  %v635 = vpop.permute.xlu0 %634
  %v637 = vadd.f32 %v617, %v635
  %v638 = vadd.f32 %v620, %v635
  %v639 = vadd.f32 %v623, %v635
  %v640 = vadd.f32 %v626, %v635
  %v647 = vperm.slane %v172, 0
  %v648 = vlaneseq
  %v649 = vshrl.u32 %v648, 7
  %651 = vset.pattern.permute.xlu0 %v649
  %652 = vperm.xlu0 %651, %v647
  %v653 = vpop.permute.xlu0 %652
  %v654 = vperm.slane %v172, 1
  %v655 = vlaneseq
  %v656 = vshrl.u32 %v655, 7
  %658 = vset.pattern.permute.xlu0 %v656
  %659 = vperm.xlu0 %658, %v654
  %v660 = vpop.permute.xlu0 %659
  %v661 = vperm.slane %v172, 2
  %v662 = vlaneseq
  %v663 = vshrl.u32 %v662, 7
  %665 = vset.pattern.permute.xlu0 %v663
  %666 = vperm.xlu0 %665, %v661
  %v667 = vpop.permute.xlu0 %666
  %v668 = vperm.slane %v172, 3
  %v669 = vlaneseq
  %v670 = vshrl.u32 %v669, 7
  %672 = vset.pattern.permute.xlu0 %v670
  %673 = vperm.xlu0 %672, %v668
  %v674 = vpop.permute.xlu0 %673
  %v675 = vperm.slane %v172, 4
  %v676 = vlaneseq
  %v677 = vshrl.u32 %v676, 7
  %679 = vset.pattern.permute.xlu0 %v677
  %680 = vperm.xlu0 %679, %v675
  %v681 = vpop.permute.xlu0 %680
  %v682 = vperm.slane %v172, 5
  %v683 = vlaneseq
  %v684 = vshrl.u32 %v683, 7
  %686 = vset.pattern.permute.xlu0 %v684
  %687 = vperm.xlu0 %686, %v682
  %v688 = vpop.permute.xlu0 %687
  %v689 = vperm.slane %v172, 6
  %v690 = vlaneseq
  %v691 = vshrl.u32 %v690, 7
  %693 = vset.pattern.permute.xlu0 %v691
  %694 = vperm.xlu0 %693, %v689
  %v695 = vpop.permute.xlu0 %694
  %v696 = vperm.slane %v172, 7
  %v697 = vlaneseq
  %v698 = vshrl.u32 %v697, 7
  %700 = vset.pattern.permute.xlu0 %v698
  %701 = vperm.xlu0 %700, %v696
  %v702 = vpop.permute.xlu0 %701
  %v703 = vperm.slane %v173, 0
  %v704 = vlaneseq
  %v705 = vshrl.u32 %v704, 7
  %707 = vset.pattern.permute.xlu0 %v705
  %708 = vperm.xlu0 %707, %v703
  %v709 = vpop.permute.xlu0 %708
  %v710 = vperm.slane %v173, 1
  %v711 = vlaneseq
  %v712 = vshrl.u32 %v711, 7
  %714 = vset.pattern.permute.xlu0 %v712
  %715 = vperm.xlu0 %714, %v710
  %v716 = vpop.permute.xlu0 %715
  %v717 = vperm.slane %v173, 2
  %v718 = vlaneseq
  %v719 = vshrl.u32 %v718, 7
  %721 = vset.pattern.permute.xlu0 %v719
  %722 = vperm.xlu0 %721, %v717
  %v723 = vpop.permute.xlu0 %722
  %v724 = vperm.slane %v173, 3
  %v725 = vlaneseq
  %v726 = vshrl.u32 %v725, 7
  %728 = vset.pattern.permute.xlu0 %v726
  %729 = vperm.xlu0 %728, %v724
  %v730 = vpop.permute.xlu0 %729
  %v731 = vperm.slane %v173, 4
  %v732 = vlaneseq
  %v733 = vshrl.u32 %v732, 7
  %735 = vset.pattern.permute.xlu0 %v733
  %736 = vperm.xlu0 %735, %v731
  %v737 = vpop.permute.xlu0 %736
  %v738 = vperm.slane %v173, 5
  %v739 = vlaneseq
  %v740 = vshrl.u32 %v739, 7
  %742 = vset.pattern.permute.xlu0 %v740
  %743 = vperm.xlu0 %742, %v738
  %v744 = vpop.permute.xlu0 %743
  %v745 = vperm.slane %v173, 6
  %v746 = vlaneseq
  %v747 = vshrl.u32 %v746, 7
  %749 = vset.pattern.permute.xlu0 %v747
  %750 = vperm.xlu0 %749, %v745
  %v751 = vpop.permute.xlu0 %750
  %v752 = vperm.slane %v173, 7
  %v753 = vlaneseq
  %v754 = vshrl.u32 %v753, 7
  %756 = vset.pattern.permute.xlu0 %v754
  %757 = vperm.xlu0 %756, %v752
  %v758 = vpop.permute.xlu0 %757
  %v759 = vperm.slane %v174, 0
  %v760 = vlaneseq
  %v761 = vshrl.u32 %v760, 7
  %763 = vset.pattern.permute.xlu0 %v761
  %764 = vperm.xlu0 %763, %v759
  %v765 = vpop.permute.xlu0 %764
  %v766 = vperm.slane %v174, 1
  %v767 = vlaneseq
  %v768 = vshrl.u32 %v767, 7
  %770 = vset.pattern.permute.xlu0 %v768
  %771 = vperm.xlu0 %770, %v766
  %v772 = vpop.permute.xlu0 %771
  %v773 = vperm.slane %v174, 2
  %v774 = vlaneseq
  %v775 = vshrl.u32 %v774, 7
  %777 = vset.pattern.permute.xlu0 %v775
  %778 = vperm.xlu0 %777, %v773
  %v779 = vpop.permute.xlu0 %778
  %v780 = vperm.slane %v174, 3
  %v781 = vlaneseq
  %v782 = vshrl.u32 %v781, 7
  %784 = vset.pattern.permute.xlu0 %v782
  %785 = vperm.xlu0 %784, %v780
  %v786 = vpop.permute.xlu0 %785
  %v787 = vperm.slane %v174, 4
  %v788 = vlaneseq
  %v789 = vshrl.u32 %v788, 7
  %791 = vset.pattern.permute.xlu0 %v789
  %792 = vperm.xlu0 %791, %v787
  %v793 = vpop.permute.xlu0 %792
  %v794 = vperm.slane %v174, 5
  %v795 = vlaneseq
  %v796 = vshrl.u32 %v795, 7
  %798 = vset.pattern.permute.xlu0 %v796
  %799 = vperm.xlu0 %798, %v794
  %v800 = vpop.permute.xlu0 %799
  %v801 = vperm.slane %v174, 6
  %v802 = vlaneseq
  %v803 = vshrl.u32 %v802, 7
  %805 = vset.pattern.permute.xlu0 %v803
  %806 = vperm.xlu0 %805, %v801
  %v807 = vpop.permute.xlu0 %806
  %v808 = vperm.slane %v174, 7
  %v809 = vlaneseq
  %v810 = vshrl.u32 %v809, 7
  %812 = vset.pattern.permute.xlu0 %v810
  %813 = vperm.xlu0 %812, %v808
  %v814 = vpop.permute.xlu0 %813
  %v815 = vperm.slane %v175, 0
  %v816 = vlaneseq
  %v817 = vshrl.u32 %v816, 7
  %819 = vset.pattern.permute.xlu0 %v817
  %820 = vperm.xlu0 %819, %v815
  %v821 = vpop.permute.xlu0 %820
  %v822 = vperm.slane %v175, 1
  %v823 = vlaneseq
  %v824 = vshrl.u32 %v823, 7
  %826 = vset.pattern.permute.xlu0 %v824
  %827 = vperm.xlu0 %826, %v822
  %v828 = vpop.permute.xlu0 %827
  %v829 = vperm.slane %v175, 2
  %v830 = vlaneseq
  %v831 = vshrl.u32 %v830, 7
  %833 = vset.pattern.permute.xlu0 %v831
  %834 = vperm.xlu0 %833, %v829
  %v835 = vpop.permute.xlu0 %834
  %v836 = vperm.slane %v175, 3
  %v837 = vlaneseq
  %v838 = vshrl.u32 %v837, 7
  %840 = vset.pattern.permute.xlu0 %v838
  %841 = vperm.xlu0 %840, %v836
  %v842 = vpop.permute.xlu0 %841
  %v843 = vperm.slane %v175, 4
  %v844 = vlaneseq
  %v845 = vshrl.u32 %v844, 7
  %847 = vset.pattern.permute.xlu0 %v845
  %848 = vperm.xlu0 %847, %v843
  %v849 = vpop.permute.xlu0 %848
  %v850 = vperm.slane %v175, 5
  %v851 = vlaneseq
  %v852 = vshrl.u32 %v851, 7
  %854 = vset.pattern.permute.xlu0 %v852
  %855 = vperm.xlu0 %854, %v850
  %v856 = vpop.permute.xlu0 %855
  %v857 = vperm.slane %v175, 6
  %v858 = vlaneseq
  %v859 = vshrl.u32 %v858, 7
  %861 = vset.pattern.permute.xlu0 %v859
  %862 = vperm.xlu0 %861, %v857
  %v863 = vpop.permute.xlu0 %862
  %v864 = vperm.slane %v175, 7
  %v865 = vlaneseq
  %v866 = vshrl.u32 %v865, 7
  %868 = vset.pattern.permute.xlu0 %v866
  %869 = vperm.xlu0 %868, %v864
  %v870 = vpop.permute.xlu0 %869
  %v871 = vperm.slane %v176, 0
  %v872 = vlaneseq
  %v873 = vshrl.u32 %v872, 7
  %875 = vset.pattern.permute.xlu0 %v873
  %876 = vperm.xlu0 %875, %v871
  %v877 = vpop.permute.xlu0 %876
  %v878 = vperm.slane %v176, 1
  %v879 = vlaneseq
  %v880 = vshrl.u32 %v879, 7
  %882 = vset.pattern.permute.xlu0 %v880
  %883 = vperm.xlu0 %882, %v878
  %v884 = vpop.permute.xlu0 %883
  %v885 = vperm.slane %v176, 2
  %v886 = vlaneseq
  %v887 = vshrl.u32 %v886, 7
  %889 = vset.pattern.permute.xlu0 %v887
  %890 = vperm.xlu0 %889, %v885
  %v891 = vpop.permute.xlu0 %890
  %v892 = vperm.slane %v176, 3
  %v893 = vlaneseq
  %v894 = vshrl.u32 %v893, 7
  %896 = vset.pattern.permute.xlu0 %v894
  %897 = vperm.xlu0 %896, %v892
  %v898 = vpop.permute.xlu0 %897
  %v899 = vperm.slane %v176, 4
  %v900 = vlaneseq
  %v901 = vshrl.u32 %v900, 7
  %903 = vset.pattern.permute.xlu0 %v901
  %904 = vperm.xlu0 %903, %v899
  %v905 = vpop.permute.xlu0 %904
  %v906 = vperm.slane %v176, 5
  %v907 = vlaneseq
  %v908 = vshrl.u32 %v907, 7
  %910 = vset.pattern.permute.xlu0 %v908
  %911 = vperm.xlu0 %910, %v906
  %v912 = vpop.permute.xlu0 %911
  %v913 = vperm.slane %v176, 6
  %v914 = vlaneseq
  %v915 = vshrl.u32 %v914, 7
  %917 = vset.pattern.permute.xlu0 %v915
  %918 = vperm.xlu0 %917, %v913
  %v919 = vpop.permute.xlu0 %918
  %v920 = vperm.slane %v176, 7
  %v921 = vlaneseq
  %v922 = vshrl.u32 %v921, 7
  %924 = vset.pattern.permute.xlu0 %v922
  %925 = vperm.xlu0 %924, %v920
  %v926 = vpop.permute.xlu0 %925
  %v927 = vperm.slane %v177, 0
  %v928 = vlaneseq
  %v929 = vshrl.u32 %v928, 7
  %931 = vset.pattern.permute.xlu0 %v929
  %932 = vperm.xlu0 %931, %v927
  %v933 = vpop.permute.xlu0 %932
  %v934 = vperm.slane %v177, 1
  %v935 = vlaneseq
  %v936 = vshrl.u32 %v935, 7
  %938 = vset.pattern.permute.xlu0 %v936
  %939 = vperm.xlu0 %938, %v934
  %v940 = vpop.permute.xlu0 %939
  %v941 = vperm.slane %v177, 2
  %v942 = vlaneseq
  %v943 = vshrl.u32 %v942, 7
  %945 = vset.pattern.permute.xlu0 %v943
  %946 = vperm.xlu0 %945, %v941
  %v947 = vpop.permute.xlu0 %946
  %v948 = vperm.slane %v177, 3
  %v949 = vlaneseq
  %v950 = vshrl.u32 %v949, 7
  %952 = vset.pattern.permute.xlu0 %v950
  %953 = vperm.xlu0 %952, %v948
  %v954 = vpop.permute.xlu0 %953
  %v955 = vperm.slane %v177, 4
  %v956 = vlaneseq
  %v957 = vshrl.u32 %v956, 7
  %959 = vset.pattern.permute.xlu0 %v957
  %960 = vperm.xlu0 %959, %v955
  %v961 = vpop.permute.xlu0 %960
  %v962 = vperm.slane %v177, 5
  %v963 = vlaneseq
  %v964 = vshrl.u32 %v963, 7
  %966 = vset.pattern.permute.xlu0 %v964
  %967 = vperm.xlu0 %966, %v962
  %v968 = vpop.permute.xlu0 %967
  %v969 = vperm.slane %v177, 6
  %v970 = vlaneseq
  %v971 = vshrl.u32 %v970, 7
  %973 = vset.pattern.permute.xlu0 %v971
  %974 = vperm.xlu0 %973, %v969
  %v975 = vpop.permute.xlu0 %974
  %v976 = vperm.slane %v177, 7
  %v977 = vlaneseq
  %v978 = vshrl.u32 %v977, 7
  %980 = vset.pattern.permute.xlu0 %v978
  %981 = vperm.xlu0 %980, %v976
  %v982 = vpop.permute.xlu0 %981
  %v1031 = vmul.f32 %v637, %v653
  %v1032 = vmul.f32 %v637, %v660
  %v1033 = vmul.f32 %v637, %v667
  %v1034 = vmul.f32 %v637, %v674
  %v1035 = vmul.f32 %v637, %v681
  %v1036 = vmul.f32 %v637, %v688
  %v1037 = vmul.f32 %v637, %v695
  %v1038 = vmul.f32 %v637, %v702
  %v1039 = vmul.f32 %v637, %v709
  %v1040 = vmul.f32 %v637, %v716
  %v1041 = vmul.f32 %v637, %v723
  %v1042 = vmul.f32 %v637, %v730
  %v1043 = vmul.f32 %v637, %v737
  %v1044 = vmul.f32 %v637, %v744
  %v1045 = vmul.f32 %v637, %v751
  %v1046 = vmul.f32 %v637, %v758
  %v1047 = vmul.f32 %v637, %v765
  %v1048 = vmul.f32 %v637, %v772
  %v1049 = vmul.f32 %v637, %v779
  %v1050 = vmul.f32 %v637, %v786
  %v1051 = vmul.f32 %v637, %v793
  %v1052 = vmul.f32 %v637, %v800
  %v1053 = vmul.f32 %v637, %v807
  %v1054 = vmul.f32 %v637, %v814
  %v1055 = vmul.f32 %v637, %v821
  %v1056 = vmul.f32 %v637, %v828
  %v1057 = vmul.f32 %v637, %v835
  %v1058 = vmul.f32 %v637, %v842
  %v1059 = vmul.f32 %v637, %v849
  %v1060 = vmul.f32 %v637, %v856
  %v1061 = vmul.f32 %v637, %v863
  %v1062 = vmul.f32 %v637, %v870
  %v1063 = vmul.f32 %v637, %v877
  %v1064 = vmul.f32 %v637, %v884
  %v1065 = vmul.f32 %v637, %v891
  %v1066 = vmul.f32 %v637, %v898
  %v1067 = vmul.f32 %v637, %v905
  %v1068 = vmul.f32 %v637, %v912
  %v1069 = vmul.f32 %v637, %v919
  %v1070 = vmul.f32 %v637, %v926
  %v1071 = vmul.f32 %v637, %v933
  %v1072 = vmul.f32 %v637, %v940
  %v1073 = vmul.f32 %v637, %v947
  %v1074 = vmul.f32 %v637, %v954
  %v1075 = vmul.f32 %v637, %v961
  %v1076 = vmul.f32 %v637, %v968
  %v1077 = vmul.f32 %v637, %v975
  %v1078 = vmul.f32 %v637, %v982
  %v1079 = vmul.f32 %v638, %v653
  %v1080 = vmul.f32 %v638, %v660
  %v1081 = vmul.f32 %v638, %v667
  %v1082 = vmul.f32 %v638, %v674
  %v1083 = vmul.f32 %v638, %v681
  %v1084 = vmul.f32 %v638, %v688
  %v1085 = vmul.f32 %v638, %v695
  %v1086 = vmul.f32 %v638, %v702
  %v1087 = vmul.f32 %v638, %v709
  %v1088 = vmul.f32 %v638, %v716
  %v1089 = vmul.f32 %v638, %v723
  %v1090 = vmul.f32 %v638, %v730
  %v1091 = vmul.f32 %v638, %v737
  %v1092 = vmul.f32 %v638, %v744
  %v1093 = vmul.f32 %v638, %v751
  %v1094 = vmul.f32 %v638, %v758
  %v1095 = vmul.f32 %v638, %v765
  %v1096 = vmul.f32 %v638, %v772
  %v1097 = vmul.f32 %v638, %v779
  %v1098 = vmul.f32 %v638, %v786
  %v1099 = vmul.f32 %v638, %v793
  %v1100 = vmul.f32 %v638, %v800
  %v1101 = vmul.f32 %v638, %v807
  %v1102 = vmul.f32 %v638, %v814
  %v1103 = vmul.f32 %v638, %v821
  %v1104 = vmul.f32 %v638, %v828
  %v1105 = vmul.f32 %v638, %v835
  %v1106 = vmul.f32 %v638, %v842
  %v1107 = vmul.f32 %v638, %v849
  %v1108 = vmul.f32 %v638, %v856
  %v1109 = vmul.f32 %v638, %v863
  %v1110 = vmul.f32 %v638, %v870
  %v1111 = vmul.f32 %v638, %v877
  %v1112 = vmul.f32 %v638, %v884
  %v1113 = vmul.f32 %v638, %v891
  %v1114 = vmul.f32 %v638, %v898
  %v1115 = vmul.f32 %v638, %v905
  %v1116 = vmul.f32 %v638, %v912
  %v1117 = vmul.f32 %v638, %v919
  %v1118 = vmul.f32 %v638, %v926
  %v1119 = vmul.f32 %v638, %v933
  %v1120 = vmul.f32 %v638, %v940
  %v1121 = vmul.f32 %v638, %v947
  %v1122 = vmul.f32 %v638, %v954
  %v1123 = vmul.f32 %v638, %v961
  %v1124 = vmul.f32 %v638, %v968
  %v1125 = vmul.f32 %v638, %v975
  %v1126 = vmul.f32 %v638, %v982
  %v1127 = vmul.f32 %v639, %v653
  %v1128 = vmul.f32 %v639, %v660
  %v1129 = vmul.f32 %v639, %v667
  %v1130 = vmul.f32 %v639, %v674
  %v1131 = vmul.f32 %v639, %v681
  %v1132 = vmul.f32 %v639, %v688
  %v1133 = vmul.f32 %v639, %v695
  %v1134 = vmul.f32 %v639, %v702
  %v1135 = vmul.f32 %v639, %v709
  %v1136 = vmul.f32 %v639, %v716
  %v1137 = vmul.f32 %v639, %v723
  %v1138 = vmul.f32 %v639, %v730
  %v1139 = vmul.f32 %v639, %v737
  %v1140 = vmul.f32 %v639, %v744
  %v1141 = vmul.f32 %v639, %v751
  %v1142 = vmul.f32 %v639, %v758
  %v1143 = vmul.f32 %v639, %v765
  %v1144 = vmul.f32 %v639, %v772
  %v1145 = vmul.f32 %v639, %v779
  %v1146 = vmul.f32 %v639, %v786
  %v1147 = vmul.f32 %v639, %v793
  %v1148 = vmul.f32 %v639, %v800
  %v1149 = vmul.f32 %v639, %v807
  %v1150 = vmul.f32 %v639, %v814
  %v1151 = vmul.f32 %v639, %v821
  %v1152 = vmul.f32 %v639, %v828
  %v1153 = vmul.f32 %v639, %v835
  %v1154 = vmul.f32 %v639, %v842
  %v1155 = vmul.f32 %v639, %v849
  %v1156 = vmul.f32 %v639, %v856
  %v1157 = vmul.f32 %v639, %v863
  %v1158 = vmul.f32 %v639, %v870
  %v1159 = vmul.f32 %v639, %v877
  %v1160 = vmul.f32 %v639, %v884
  %v1161 = vmul.f32 %v639, %v891
  %v1162 = vmul.f32 %v639, %v898
  %v1163 = vmul.f32 %v639, %v905
  %v1164 = vmul.f32 %v639, %v912
  %v1165 = vmul.f32 %v639, %v919
  %v1166 = vmul.f32 %v639, %v926
  %v1167 = vmul.f32 %v639, %v933
  %v1168 = vmul.f32 %v639, %v940
  %v1169 = vmul.f32 %v639, %v947
  %v1170 = vmul.f32 %v639, %v954
  %v1171 = vmul.f32 %v639, %v961
  %v1172 = vmul.f32 %v639, %v968
  %v1173 = vmul.f32 %v639, %v975
  %v1174 = vmul.f32 %v639, %v982
  %v1175 = vmul.f32 %v640, %v653
  %v1176 = vmul.f32 %v640, %v660
  %v1177 = vmul.f32 %v640, %v667
  %v1178 = vmul.f32 %v640, %v674
  %v1179 = vmul.f32 %v640, %v681
  %v1180 = vmul.f32 %v640, %v688
  %v1181 = vmul.f32 %v640, %v695
  %v1182 = vmul.f32 %v640, %v702
  %v1183 = vmul.f32 %v640, %v709
  %v1184 = vmul.f32 %v640, %v716
  %v1185 = vmul.f32 %v640, %v723
  %v1186 = vmul.f32 %v640, %v730
  %v1187 = vmul.f32 %v640, %v737
  %v1188 = vmul.f32 %v640, %v744
  %v1189 = vmul.f32 %v640, %v751
  %v1190 = vmul.f32 %v640, %v758
  %v1191 = vmul.f32 %v640, %v765
  %v1192 = vmul.f32 %v640, %v772
  %v1193 = vmul.f32 %v640, %v779
  %v1194 = vmul.f32 %v640, %v786
  %v1195 = vmul.f32 %v640, %v793
  %v1196 = vmul.f32 %v640, %v800
  %v1197 = vmul.f32 %v640, %v807
  %v1198 = vmul.f32 %v640, %v814
  %v1199 = vmul.f32 %v640, %v821
  %v1200 = vmul.f32 %v640, %v828
  %v1201 = vmul.f32 %v640, %v835
  %v1202 = vmul.f32 %v640, %v842
  %v1203 = vmul.f32 %v640, %v849
  %v1204 = vmul.f32 %v640, %v856
  %v1205 = vmul.f32 %v640, %v863
  %v1206 = vmul.f32 %v640, %v870
  %v1207 = vmul.f32 %v640, %v877
  %v1208 = vmul.f32 %v640, %v884
  %v1209 = vmul.f32 %v640, %v891
  %v1210 = vmul.f32 %v640, %v898
  %v1211 = vmul.f32 %v640, %v905
  %v1212 = vmul.f32 %v640, %v912
  %v1213 = vmul.f32 %v640, %v919
  %v1214 = vmul.f32 %v640, %v926
  %v1215 = vmul.f32 %v640, %v933
  %v1216 = vmul.f32 %v640, %v940
  %v1217 = vmul.f32 %v640, %v947
  %v1218 = vmul.f32 %v640, %v954
  %v1219 = vmul.f32 %v640, %v961
  %v1220 = vmul.f32 %v640, %v968
  %v1221 = vmul.f32 %v640, %v975
  %v1222 = vmul.f32 %v640, %v982
  %1415 = vset.pattern.permute.xlu0 0
  %1416 = vperm.xlu0 %1415, %v1031
  %v1417 = vpop.permute.xlu0 %1416
  %1418 = vset.pattern.permute.xlu0 0
  %1419 = vperm.xlu0 %1418, %v1032
  %v1420 = vpop.permute.xlu0 %1419
  %1421 = vset.pattern.permute.xlu0 0
  %1422 = vperm.xlu0 %1421, %v1033
  %v1423 = vpop.permute.xlu0 %1422
  %1424 = vset.pattern.permute.xlu0 0
  %1425 = vperm.xlu0 %1424, %v1034
  %v1426 = vpop.permute.xlu0 %1425
  %1427 = vset.pattern.permute.xlu0 0
  %1428 = vperm.xlu0 %1427, %v1035
  %v1429 = vpop.permute.xlu0 %1428
  %1430 = vset.pattern.permute.xlu0 0
  %1431 = vperm.xlu0 %1430, %v1036
  %v1432 = vpop.permute.xlu0 %1431
  %1433 = vset.pattern.permute.xlu0 0
  %1434 = vperm.xlu0 %1433, %v1037
  %v1435 = vpop.permute.xlu0 %1434
  %1436 = vset.pattern.permute.xlu0 0
  %1437 = vperm.xlu0 %1436, %v1038
  %v1438 = vpop.permute.xlu0 %1437
  %1439 = vset.pattern.permute.xlu0 0
  %1440 = vperm.xlu0 %1439, %v1039
  %v1441 = vpop.permute.xlu0 %1440
  %1442 = vset.pattern.permute.xlu0 0
  %1443 = vperm.xlu0 %1442, %v1040
  %v1444 = vpop.permute.xlu0 %1443
  %1445 = vset.pattern.permute.xlu0 0
  %1446 = vperm.xlu0 %1445, %v1041
  %v1447 = vpop.permute.xlu0 %1446
  %1448 = vset.pattern.permute.xlu0 0
  %1449 = vperm.xlu0 %1448, %v1042
  %v1450 = vpop.permute.xlu0 %1449
  %1451 = vset.pattern.permute.xlu0 0
  %1452 = vperm.xlu0 %1451, %v1043
  %v1453 = vpop.permute.xlu0 %1452
  %1454 = vset.pattern.permute.xlu0 0
  %1455 = vperm.xlu0 %1454, %v1044
  %v1456 = vpop.permute.xlu0 %1455
  %1457 = vset.pattern.permute.xlu0 0
  %1458 = vperm.xlu0 %1457, %v1045
  %v1459 = vpop.permute.xlu0 %1458
  %1460 = vset.pattern.permute.xlu0 0
  %1461 = vperm.xlu0 %1460, %v1046
  %v1462 = vpop.permute.xlu0 %1461
  %1463 = vset.pattern.permute.xlu0 0
  %1464 = vperm.xlu0 %1463, %v1047
  %v1465 = vpop.permute.xlu0 %1464
  %1466 = vset.pattern.permute.xlu0 0
  %1467 = vperm.xlu0 %1466, %v1048
  %v1468 = vpop.permute.xlu0 %1467
  %1469 = vset.pattern.permute.xlu0 0
  %1470 = vperm.xlu0 %1469, %v1049
  %v1471 = vpop.permute.xlu0 %1470
  %1472 = vset.pattern.permute.xlu0 0
  %1473 = vperm.xlu0 %1472, %v1050
  %v1474 = vpop.permute.xlu0 %1473
  %1475 = vset.pattern.permute.xlu0 0
  %1476 = vperm.xlu0 %1475, %v1051
  %v1477 = vpop.permute.xlu0 %1476
  %1478 = vset.pattern.permute.xlu0 0
  %1479 = vperm.xlu0 %1478, %v1052
  %v1480 = vpop.permute.xlu0 %1479
  %1481 = vset.pattern.permute.xlu0 0
  %1482 = vperm.xlu0 %1481, %v1053
  %v1483 = vpop.permute.xlu0 %1482
  %1484 = vset.pattern.permute.xlu0 0
  %1485 = vperm.xlu0 %1484, %v1054
  %v1486 = vpop.permute.xlu0 %1485
  %1487 = vset.pattern.permute.xlu0 0
  %1488 = vperm.xlu0 %1487, %v1055
  %v1489 = vpop.permute.xlu0 %1488
  %1490 = vset.pattern.permute.xlu0 0
  %1491 = vperm.xlu0 %1490, %v1056
  %v1492 = vpop.permute.xlu0 %1491
  %1493 = vset.pattern.permute.xlu0 0
  %1494 = vperm.xlu0 %1493, %v1057
  %v1495 = vpop.permute.xlu0 %1494
  %1496 = vset.pattern.permute.xlu0 0
  %1497 = vperm.xlu0 %1496, %v1058
  %v1498 = vpop.permute.xlu0 %1497
  %1499 = vset.pattern.permute.xlu0 0
  %1500 = vperm.xlu0 %1499, %v1059
  %v1501 = vpop.permute.xlu0 %1500
  %1502 = vset.pattern.permute.xlu0 0
  %1503 = vperm.xlu0 %1502, %v1060
  %v1504 = vpop.permute.xlu0 %1503
  %1505 = vset.pattern.permute.xlu0 0
  %1506 = vperm.xlu0 %1505, %v1061
  %v1507 = vpop.permute.xlu0 %1506
  %1508 = vset.pattern.permute.xlu0 0
  %1509 = vperm.xlu0 %1508, %v1062
  %v1510 = vpop.permute.xlu0 %1509
  %1511 = vset.pattern.permute.xlu0 0
  %1512 = vperm.xlu0 %1511, %v1063
  %v1513 = vpop.permute.xlu0 %1512
  %1514 = vset.pattern.permute.xlu0 0
  %1515 = vperm.xlu0 %1514, %v1064
  %v1516 = vpop.permute.xlu0 %1515
  %1517 = vset.pattern.permute.xlu0 0
  %1518 = vperm.xlu0 %1517, %v1065
  %v1519 = vpop.permute.xlu0 %1518
  %1520 = vset.pattern.permute.xlu0 0
  %1521 = vperm.xlu0 %1520, %v1066
  %v1522 = vpop.permute.xlu0 %1521
  %1523 = vset.pattern.permute.xlu0 0
  %1524 = vperm.xlu0 %1523, %v1067
  %v1525 = vpop.permute.xlu0 %1524
  %1526 = vset.pattern.permute.xlu0 0
  %1527 = vperm.xlu0 %1526, %v1068
  %v1528 = vpop.permute.xlu0 %1527
  %1529 = vset.pattern.permute.xlu0 0
  %1530 = vperm.xlu0 %1529, %v1069
  %v1531 = vpop.permute.xlu0 %1530
  %1532 = vset.pattern.permute.xlu0 0
  %1533 = vperm.xlu0 %1532, %v1070
  %v1534 = vpop.permute.xlu0 %1533
  %1535 = vset.pattern.permute.xlu0 0
  %1536 = vperm.xlu0 %1535, %v1071
  %v1537 = vpop.permute.xlu0 %1536
  %1538 = vset.pattern.permute.xlu0 0
  %1539 = vperm.xlu0 %1538, %v1072
  %v1540 = vpop.permute.xlu0 %1539
  %1541 = vset.pattern.permute.xlu0 0
  %1542 = vperm.xlu0 %1541, %v1073
  %v1543 = vpop.permute.xlu0 %1542
  %1544 = vset.pattern.permute.xlu0 0
  %1545 = vperm.xlu0 %1544, %v1074
  %v1546 = vpop.permute.xlu0 %1545
  %1547 = vset.pattern.permute.xlu0 0
  %1548 = vperm.xlu0 %1547, %v1075
  %v1549 = vpop.permute.xlu0 %1548
  %1550 = vset.pattern.permute.xlu0 0
  %1551 = vperm.xlu0 %1550, %v1076
  %v1552 = vpop.permute.xlu0 %1551
  %1553 = vset.pattern.permute.xlu0 0
  %1554 = vperm.xlu0 %1553, %v1077
  %v1555 = vpop.permute.xlu0 %1554
  %1556 = vset.pattern.permute.xlu0 0
  %1557 = vperm.xlu0 %1556, %v1078
  %v1558 = vpop.permute.xlu0 %1557
  %1559 = vset.pattern.permute.xlu0 0
  %1560 = vperm.xlu0 %1559, %v1079
  %v1561 = vpop.permute.xlu0 %1560
  %1562 = vset.pattern.permute.xlu0 0
  %1563 = vperm.xlu0 %1562, %v1080
  %v1564 = vpop.permute.xlu0 %1563
  %1565 = vset.pattern.permute.xlu0 0
  %1566 = vperm.xlu0 %1565, %v1081
  %v1567 = vpop.permute.xlu0 %1566
  %1568 = vset.pattern.permute.xlu0 0
  %1569 = vperm.xlu0 %1568, %v1082
  %v1570 = vpop.permute.xlu0 %1569
  %1571 = vset.pattern.permute.xlu0 0
  %1572 = vperm.xlu0 %1571, %v1083
  %v1573 = vpop.permute.xlu0 %1572
  %1574 = vset.pattern.permute.xlu0 0
  %1575 = vperm.xlu0 %1574, %v1084
  %v1576 = vpop.permute.xlu0 %1575
  %1577 = vset.pattern.permute.xlu0 0
  %1578 = vperm.xlu0 %1577, %v1085
  %v1579 = vpop.permute.xlu0 %1578
  %1580 = vset.pattern.permute.xlu0 0
  %1581 = vperm.xlu0 %1580, %v1086
  %v1582 = vpop.permute.xlu0 %1581
  %1583 = vset.pattern.permute.xlu0 0
  %1584 = vperm.xlu0 %1583, %v1087
  %v1585 = vpop.permute.xlu0 %1584
  %1586 = vset.pattern.permute.xlu0 0
  %1587 = vperm.xlu0 %1586, %v1088
  %v1588 = vpop.permute.xlu0 %1587
  %1589 = vset.pattern.permute.xlu0 0
  %1590 = vperm.xlu0 %1589, %v1089
  %v1591 = vpop.permute.xlu0 %1590
  %1592 = vset.pattern.permute.xlu0 0
  %1593 = vperm.xlu0 %1592, %v1090
  %v1594 = vpop.permute.xlu0 %1593
  %1595 = vset.pattern.permute.xlu0 0
  %1596 = vperm.xlu0 %1595, %v1091
  %v1597 = vpop.permute.xlu0 %1596
  %1598 = vset.pattern.permute.xlu0 0
  %1599 = vperm.xlu0 %1598, %v1092
  %v1600 = vpop.permute.xlu0 %1599
  %1601 = vset.pattern.permute.xlu0 0
  %1602 = vperm.xlu0 %1601, %v1093
  %v1603 = vpop.permute.xlu0 %1602
  %1604 = vset.pattern.permute.xlu0 0
  %1605 = vperm.xlu0 %1604, %v1094
  %v1606 = vpop.permute.xlu0 %1605
  %1607 = vset.pattern.permute.xlu0 0
  %1608 = vperm.xlu0 %1607, %v1095
  %v1609 = vpop.permute.xlu0 %1608
  %1610 = vset.pattern.permute.xlu0 0
  %1611 = vperm.xlu0 %1610, %v1096
  %v1612 = vpop.permute.xlu0 %1611
  %1613 = vset.pattern.permute.xlu0 0
  %1614 = vperm.xlu0 %1613, %v1097
  %v1615 = vpop.permute.xlu0 %1614
  %1616 = vset.pattern.permute.xlu0 0
  %1617 = vperm.xlu0 %1616, %v1098
  %v1618 = vpop.permute.xlu0 %1617
  %1619 = vset.pattern.permute.xlu0 0
  %1620 = vperm.xlu0 %1619, %v1099
  %v1621 = vpop.permute.xlu0 %1620
  %1622 = vset.pattern.permute.xlu0 0
  %1623 = vperm.xlu0 %1622, %v1100
  %v1624 = vpop.permute.xlu0 %1623
  %1625 = vset.pattern.permute.xlu0 0
  %1626 = vperm.xlu0 %1625, %v1101
  %v1627 = vpop.permute.xlu0 %1626
  %1628 = vset.pattern.permute.xlu0 0
  %1629 = vperm.xlu0 %1628, %v1102
  %v1630 = vpop.permute.xlu0 %1629
  %1631 = vset.pattern.permute.xlu0 0
  %1632 = vperm.xlu0 %1631, %v1103
  %v1633 = vpop.permute.xlu0 %1632
  %1634 = vset.pattern.permute.xlu0 0
  %1635 = vperm.xlu0 %1634, %v1104
  %v1636 = vpop.permute.xlu0 %1635
  %1637 = vset.pattern.permute.xlu0 0
  %1638 = vperm.xlu0 %1637, %v1105
  %v1639 = vpop.permute.xlu0 %1638
  %1640 = vset.pattern.permute.xlu0 0
  %1641 = vperm.xlu0 %1640, %v1106
  %v1642 = vpop.permute.xlu0 %1641
  %1643 = vset.pattern.permute.xlu0 0
  %1644 = vperm.xlu0 %1643, %v1107
  %v1645 = vpop.permute.xlu0 %1644
  %1646 = vset.pattern.permute.xlu0 0
  %1647 = vperm.xlu0 %1646, %v1108
  %v1648 = vpop.permute.xlu0 %1647
  %1649 = vset.pattern.permute.xlu0 0
  %1650 = vperm.xlu0 %1649, %v1109
  %v1651 = vpop.permute.xlu0 %1650
  %1652 = vset.pattern.permute.xlu0 0
  %1653 = vperm.xlu0 %1652, %v1110
  %v1654 = vpop.permute.xlu0 %1653
  %1655 = vset.pattern.permute.xlu0 0
  %1656 = vperm.xlu0 %1655, %v1111
  %v1657 = vpop.permute.xlu0 %1656
  %1658 = vset.pattern.permute.xlu0 0
  %1659 = vperm.xlu0 %1658, %v1112
  %v1660 = vpop.permute.xlu0 %1659
  %1661 = vset.pattern.permute.xlu0 0
  %1662 = vperm.xlu0 %1661, %v1113
  %v1663 = vpop.permute.xlu0 %1662
  %1664 = vset.pattern.permute.xlu0 0
  %1665 = vperm.xlu0 %1664, %v1114
  %v1666 = vpop.permute.xlu0 %1665
  %1667 = vset.pattern.permute.xlu0 0
  %1668 = vperm.xlu0 %1667, %v1115
  %v1669 = vpop.permute.xlu0 %1668
  %1670 = vset.pattern.permute.xlu0 0
  %1671 = vperm.xlu0 %1670, %v1116
  %v1672 = vpop.permute.xlu0 %1671
  %1673 = vset.pattern.permute.xlu0 0
  %1674 = vperm.xlu0 %1673, %v1117
  %v1675 = vpop.permute.xlu0 %1674
  %1676 = vset.pattern.permute.xlu0 0
  %1677 = vperm.xlu0 %1676, %v1118
  %v1678 = vpop.permute.xlu0 %1677
  %1679 = vset.pattern.permute.xlu0 0
  %1680 = vperm.xlu0 %1679, %v1119
  %v1681 = vpop.permute.xlu0 %1680
  %1682 = vset.pattern.permute.xlu0 0
  %1683 = vperm.xlu0 %1682, %v1120
  %v1684 = vpop.permute.xlu0 %1683
  %1685 = vset.pattern.permute.xlu0 0
  %1686 = vperm.xlu0 %1685, %v1121
  %v1687 = vpop.permute.xlu0 %1686
  %1688 = vset.pattern.permute.xlu0 0
  %1689 = vperm.xlu0 %1688, %v1122
  %v1690 = vpop.permute.xlu0 %1689
  %1691 = vset.pattern.permute.xlu0 0
  %1692 = vperm.xlu0 %1691, %v1123
  %v1693 = vpop.permute.xlu0 %1692
  %1694 = vset.pattern.permute.xlu0 0
  %1695 = vperm.xlu0 %1694, %v1124
  %v1696 = vpop.permute.xlu0 %1695
  %1697 = vset.pattern.permute.xlu0 0
  %1698 = vperm.xlu0 %1697, %v1125
  %v1699 = vpop.permute.xlu0 %1698
  %1700 = vset.pattern.permute.xlu0 0
  %1701 = vperm.xlu0 %1700, %v1126
  %v1702 = vpop.permute.xlu0 %1701
  %1703 = vset.pattern.permute.xlu0 0
  %1704 = vperm.xlu0 %1703, %v1127
  %v1705 = vpop.permute.xlu0 %1704
  %1706 = vset.pattern.permute.xlu0 0
  %1707 = vperm.xlu0 %1706, %v1128
  %v1708 = vpop.permute.xlu0 %1707
  %1709 = vset.pattern.permute.xlu0 0
  %1710 = vperm.xlu0 %1709, %v1129
  %v1711 = vpop.permute.xlu0 %1710
  %1712 = vset.pattern.permute.xlu0 0
  %1713 = vperm.xlu0 %1712, %v1130
  %v1714 = vpop.permute.xlu0 %1713
  %1715 = vset.pattern.permute.xlu0 0
  %1716 = vperm.xlu0 %1715, %v1131
  %v1717 = vpop.permute.xlu0 %1716
  %1718 = vset.pattern.permute.xlu0 0
  %1719 = vperm.xlu0 %1718, %v1132
  %v1720 = vpop.permute.xlu0 %1719
  %1721 = vset.pattern.permute.xlu0 0
  %1722 = vperm.xlu0 %1721, %v1133
  %v1723 = vpop.permute.xlu0 %1722
  %1724 = vset.pattern.permute.xlu0 0
  %1725 = vperm.xlu0 %1724, %v1134
  %v1726 = vpop.permute.xlu0 %1725
  %1727 = vset.pattern.permute.xlu0 0
  %1728 = vperm.xlu0 %1727, %v1135
  %v1729 = vpop.permute.xlu0 %1728
  %1730 = vset.pattern.permute.xlu0 0
  %1731 = vperm.xlu0 %1730, %v1136
  %v1732 = vpop.permute.xlu0 %1731
  %1733 = vset.pattern.permute.xlu0 0
  %1734 = vperm.xlu0 %1733, %v1137
  %v1735 = vpop.permute.xlu0 %1734
  %1736 = vset.pattern.permute.xlu0 0
  %1737 = vperm.xlu0 %1736, %v1138
  %v1738 = vpop.permute.xlu0 %1737
  %1739 = vset.pattern.permute.xlu0 0
  %1740 = vperm.xlu0 %1739, %v1139
  %v1741 = vpop.permute.xlu0 %1740
  %1742 = vset.pattern.permute.xlu0 0
  %1743 = vperm.xlu0 %1742, %v1140
  %v1744 = vpop.permute.xlu0 %1743
  %1745 = vset.pattern.permute.xlu0 0
  %1746 = vperm.xlu0 %1745, %v1141
  %v1747 = vpop.permute.xlu0 %1746
  %1748 = vset.pattern.permute.xlu0 0
  %1749 = vperm.xlu0 %1748, %v1142
  %v1750 = vpop.permute.xlu0 %1749
  %1751 = vset.pattern.permute.xlu0 0
  %1752 = vperm.xlu0 %1751, %v1143
  %v1753 = vpop.permute.xlu0 %1752
  %1754 = vset.pattern.permute.xlu0 0
  %1755 = vperm.xlu0 %1754, %v1144
  %v1756 = vpop.permute.xlu0 %1755
  %1757 = vset.pattern.permute.xlu0 0
  %1758 = vperm.xlu0 %1757, %v1145
  %v1759 = vpop.permute.xlu0 %1758
  %1760 = vset.pattern.permute.xlu0 0
  %1761 = vperm.xlu0 %1760, %v1146
  %v1762 = vpop.permute.xlu0 %1761
  %1763 = vset.pattern.permute.xlu0 0
  %1764 = vperm.xlu0 %1763, %v1147
  %v1765 = vpop.permute.xlu0 %1764
  %1766 = vset.pattern.permute.xlu0 0
  %1767 = vperm.xlu0 %1766, %v1148
  %v1768 = vpop.permute.xlu0 %1767
  %1769 = vset.pattern.permute.xlu0 0
  %1770 = vperm.xlu0 %1769, %v1149
  %v1771 = vpop.permute.xlu0 %1770
  %1772 = vset.pattern.permute.xlu0 0
  %1773 = vperm.xlu0 %1772, %v1150
  %v1774 = vpop.permute.xlu0 %1773
  %1775 = vset.pattern.permute.xlu0 0
  %1776 = vperm.xlu0 %1775, %v1151
  %v1777 = vpop.permute.xlu0 %1776
  %1778 = vset.pattern.permute.xlu0 0
  %1779 = vperm.xlu0 %1778, %v1152
  %v1780 = vpop.permute.xlu0 %1779
  %1781 = vset.pattern.permute.xlu0 0
  %1782 = vperm.xlu0 %1781, %v1153
  %v1783 = vpop.permute.xlu0 %1782
  %1784 = vset.pattern.permute.xlu0 0
  %1785 = vperm.xlu0 %1784, %v1154
  %v1786 = vpop.permute.xlu0 %1785
  %1787 = vset.pattern.permute.xlu0 0
  %1788 = vperm.xlu0 %1787, %v1155
  %v1789 = vpop.permute.xlu0 %1788
  %1790 = vset.pattern.permute.xlu0 0
  %1791 = vperm.xlu0 %1790, %v1156
  %v1792 = vpop.permute.xlu0 %1791
  %1793 = vset.pattern.permute.xlu0 0
  %1794 = vperm.xlu0 %1793, %v1157
  %v1795 = vpop.permute.xlu0 %1794
  %1796 = vset.pattern.permute.xlu0 0
  %1797 = vperm.xlu0 %1796, %v1158
  %v1798 = vpop.permute.xlu0 %1797
  %1799 = vset.pattern.permute.xlu0 0
  %1800 = vperm.xlu0 %1799, %v1159
  %v1801 = vpop.permute.xlu0 %1800
  %1802 = vset.pattern.permute.xlu0 0
  %1803 = vperm.xlu0 %1802, %v1160
  %v1804 = vpop.permute.xlu0 %1803
  %1805 = vset.pattern.permute.xlu0 0
  %1806 = vperm.xlu0 %1805, %v1161
  %v1807 = vpop.permute.xlu0 %1806
  %1808 = vset.pattern.permute.xlu0 0
  %1809 = vperm.xlu0 %1808, %v1162
  %v1810 = vpop.permute.xlu0 %1809
  %1811 = vset.pattern.permute.xlu0 0
  %1812 = vperm.xlu0 %1811, %v1163
  %v1813 = vpop.permute.xlu0 %1812
  %1814 = vset.pattern.permute.xlu0 0
  %1815 = vperm.xlu0 %1814, %v1164
  %v1816 = vpop.permute.xlu0 %1815
  %1817 = vset.pattern.permute.xlu0 0
  %1818 = vperm.xlu0 %1817, %v1165
  %v1819 = vpop.permute.xlu0 %1818
  %1820 = vset.pattern.permute.xlu0 0
  %1821 = vperm.xlu0 %1820, %v1166
  %v1822 = vpop.permute.xlu0 %1821
  %1823 = vset.pattern.permute.xlu0 0
  %1824 = vperm.xlu0 %1823, %v1167
  %v1825 = vpop.permute.xlu0 %1824
  %1826 = vset.pattern.permute.xlu0 0
  %1827 = vperm.xlu0 %1826, %v1168
  %v1828 = vpop.permute.xlu0 %1827
  %1829 = vset.pattern.permute.xlu0 0
  %1830 = vperm.xlu0 %1829, %v1169
  %v1831 = vpop.permute.xlu0 %1830
  %1832 = vset.pattern.permute.xlu0 0
  %1833 = vperm.xlu0 %1832, %v1170
  %v1834 = vpop.permute.xlu0 %1833
  %1835 = vset.pattern.permute.xlu0 0
  %1836 = vperm.xlu0 %1835, %v1171
  %v1837 = vpop.permute.xlu0 %1836
  %1838 = vset.pattern.permute.xlu0 0
  %1839 = vperm.xlu0 %1838, %v1172
  %v1840 = vpop.permute.xlu0 %1839
  %1841 = vset.pattern.permute.xlu0 0
  %1842 = vperm.xlu0 %1841, %v1173
  %v1843 = vpop.permute.xlu0 %1842
  %1844 = vset.pattern.permute.xlu0 0
  %1845 = vperm.xlu0 %1844, %v1174
  %v1846 = vpop.permute.xlu0 %1845
  %1847 = vset.pattern.permute.xlu0 0
  %1848 = vperm.xlu0 %1847, %v1175
  %v1849 = vpop.permute.xlu0 %1848
  %1850 = vset.pattern.permute.xlu0 0
  %1851 = vperm.xlu0 %1850, %v1176
  %v1852 = vpop.permute.xlu0 %1851
  %1853 = vset.pattern.permute.xlu0 0
  %1854 = vperm.xlu0 %1853, %v1177
  %v1855 = vpop.permute.xlu0 %1854
  %1856 = vset.pattern.permute.xlu0 0
  %1857 = vperm.xlu0 %1856, %v1178
  %v1858 = vpop.permute.xlu0 %1857
  %1859 = vset.pattern.permute.xlu0 0
  %1860 = vperm.xlu0 %1859, %v1179
  %v1861 = vpop.permute.xlu0 %1860
  %1862 = vset.pattern.permute.xlu0 0
  %1863 = vperm.xlu0 %1862, %v1180
  %v1864 = vpop.permute.xlu0 %1863
  %1865 = vset.pattern.permute.xlu0 0
  %1866 = vperm.xlu0 %1865, %v1181
  %v1867 = vpop.permute.xlu0 %1866
  %1868 = vset.pattern.permute.xlu0 0
  %1869 = vperm.xlu0 %1868, %v1182
  %v1870 = vpop.permute.xlu0 %1869
  %1871 = vset.pattern.permute.xlu0 0
  %1872 = vperm.xlu0 %1871, %v1183
  %v1873 = vpop.permute.xlu0 %1872
  %1874 = vset.pattern.permute.xlu0 0
  %1875 = vperm.xlu0 %1874, %v1184
  %v1876 = vpop.permute.xlu0 %1875
  %1877 = vset.pattern.permute.xlu0 0
  %1878 = vperm.xlu0 %1877, %v1185
  %v1879 = vpop.permute.xlu0 %1878
  %1880 = vset.pattern.permute.xlu0 0
  %1881 = vperm.xlu0 %1880, %v1186
  %v1882 = vpop.permute.xlu0 %1881
  %1883 = vset.pattern.permute.xlu0 0
  %1884 = vperm.xlu0 %1883, %v1187
  %v1885 = vpop.permute.xlu0 %1884
  %1886 = vset.pattern.permute.xlu0 0
  %1887 = vperm.xlu0 %1886, %v1188
  %v1888 = vpop.permute.xlu0 %1887
  %1889 = vset.pattern.permute.xlu0 0
  %1890 = vperm.xlu0 %1889, %v1189
  %v1891 = vpop.permute.xlu0 %1890
  %1892 = vset.pattern.permute.xlu0 0
  %1893 = vperm.xlu0 %1892, %v1190
  %v1894 = vpop.permute.xlu0 %1893
  %1895 = vset.pattern.permute.xlu0 0
  %1896 = vperm.xlu0 %1895, %v1191
  %v1897 = vpop.permute.xlu0 %1896
  %1898 = vset.pattern.permute.xlu0 0
  %1899 = vperm.xlu0 %1898, %v1192
  %v1900 = vpop.permute.xlu0 %1899
  %1901 = vset.pattern.permute.xlu0 0
  %1902 = vperm.xlu0 %1901, %v1193
  %v1903 = vpop.permute.xlu0 %1902
  %1904 = vset.pattern.permute.xlu0 0
  %1905 = vperm.xlu0 %1904, %v1194
  %v1906 = vpop.permute.xlu0 %1905
  %1907 = vset.pattern.permute.xlu0 0
  %1908 = vperm.xlu0 %1907, %v1195
  %v1909 = vpop.permute.xlu0 %1908
  %1910 = vset.pattern.permute.xlu0 0
  %1911 = vperm.xlu0 %1910, %v1196
  %v1912 = vpop.permute.xlu0 %1911
  %1913 = vset.pattern.permute.xlu0 0
  %1914 = vperm.xlu0 %1913, %v1197
  %v1915 = vpop.permute.xlu0 %1914
  %1916 = vset.pattern.permute.xlu0 0
  %1917 = vperm.xlu0 %1916, %v1198
  %v1918 = vpop.permute.xlu0 %1917
  %1919 = vset.pattern.permute.xlu0 0
  %1920 = vperm.xlu0 %1919, %v1199
  %v1921 = vpop.permute.xlu0 %1920
  %1922 = vset.pattern.permute.xlu0 0
  %1923 = vperm.xlu0 %1922, %v1200
  %v1924 = vpop.permute.xlu0 %1923
  %1925 = vset.pattern.permute.xlu0 0
  %1926 = vperm.xlu0 %1925, %v1201
  %v1927 = vpop.permute.xlu0 %1926
  %1928 = vset.pattern.permute.xlu0 0
  %1929 = vperm.xlu0 %1928, %v1202
  %v1930 = vpop.permute.xlu0 %1929
  %1931 = vset.pattern.permute.xlu0 0
  %1932 = vperm.xlu0 %1931, %v1203
  %v1933 = vpop.permute.xlu0 %1932
  %1934 = vset.pattern.permute.xlu0 0
  %1935 = vperm.xlu0 %1934, %v1204
  %v1936 = vpop.permute.xlu0 %1935
  %1937 = vset.pattern.permute.xlu0 0
  %1938 = vperm.xlu0 %1937, %v1205
  %v1939 = vpop.permute.xlu0 %1938
  %1940 = vset.pattern.permute.xlu0 0
  %1941 = vperm.xlu0 %1940, %v1206
  %v1942 = vpop.permute.xlu0 %1941
  %1943 = vset.pattern.permute.xlu0 0
  %1944 = vperm.xlu0 %1943, %v1207
  %v1945 = vpop.permute.xlu0 %1944
  %1946 = vset.pattern.permute.xlu0 0
  %1947 = vperm.xlu0 %1946, %v1208
  %v1948 = vpop.permute.xlu0 %1947
  %1949 = vset.pattern.permute.xlu0 0
  %1950 = vperm.xlu0 %1949, %v1209
  %v1951 = vpop.permute.xlu0 %1950
  %1952 = vset.pattern.permute.xlu0 0
  %1953 = vperm.xlu0 %1952, %v1210
  %v1954 = vpop.permute.xlu0 %1953
  %1955 = vset.pattern.permute.xlu0 0
  %1956 = vperm.xlu0 %1955, %v1211
  %v1957 = vpop.permute.xlu0 %1956
  %1958 = vset.pattern.permute.xlu0 0
  %1959 = vperm.xlu0 %1958, %v1212
  %v1960 = vpop.permute.xlu0 %1959
  %1961 = vset.pattern.permute.xlu0 0
  %1962 = vperm.xlu0 %1961, %v1213
  %v1963 = vpop.permute.xlu0 %1962
  %1964 = vset.pattern.permute.xlu0 0
  %1965 = vperm.xlu0 %1964, %v1214
  %v1966 = vpop.permute.xlu0 %1965
  %1967 = vset.pattern.permute.xlu0 0
  %1968 = vperm.xlu0 %1967, %v1215
  %v1969 = vpop.permute.xlu0 %1968
  %1970 = vset.pattern.permute.xlu0 0
  %1971 = vperm.xlu0 %1970, %v1216
  %v1972 = vpop.permute.xlu0 %1971
  %1973 = vset.pattern.permute.xlu0 0
  %1974 = vperm.xlu0 %1973, %v1217
  %v1975 = vpop.permute.xlu0 %1974
  %1976 = vset.pattern.permute.xlu0 0
  %1977 = vperm.xlu0 %1976, %v1218
  %v1978 = vpop.permute.xlu0 %1977
  %1979 = vset.pattern.permute.xlu0 0
  %1980 = vperm.xlu0 %1979, %v1219
  %v1981 = vpop.permute.xlu0 %1980
  %1982 = vset.pattern.permute.xlu0 0
  %1983 = vperm.xlu0 %1982, %v1220
  %v1984 = vpop.permute.xlu0 %1983
  %1985 = vset.pattern.permute.xlu0 0
  %1986 = vperm.xlu0 %1985, %v1221
  %v1987 = vpop.permute.xlu0 %1986
  %1988 = vset.pattern.permute.xlu0 0
  %1989 = vperm.xlu0 %1988, %v1222
  %v1990 = vpop.permute.xlu0 %1989
  %v1991 = vperm.slane %v1417, %v506
  %v1992 = vperm.slane %v1420, %v506
  %v1993 = vperm.slane %v1423, %v506
  %v1994 = vperm.slane %v1426, %v506
  %v1995 = vperm.slane %v1429, %v506
  %v1996 = vperm.slane %v1432, %v506
  %v1997 = vperm.slane %v1435, %v506
  %v1998 = vperm.slane %v1438, %v506
  %v1999 = vperm.slane %v1441, %v506
  %v2000 = vperm.slane %v1444, %v506
  %v2001 = vperm.slane %v1447, %v506
  %v2002 = vperm.slane %v1450, %v506
  %v2003 = vperm.slane %v1453, %v506
  %v2004 = vperm.slane %v1456, %v506
  %v2005 = vperm.slane %v1459, %v506
  %v2006 = vperm.slane %v1462, %v506
  %v2007 = vperm.slane %v1465, %v506
  %v2008 = vperm.slane %v1468, %v506
  %v2009 = vperm.slane %v1471, %v506
  %v2010 = vperm.slane %v1474, %v506
  %v2011 = vperm.slane %v1477, %v506
  %v2012 = vperm.slane %v1480, %v506
  %v2013 = vperm.slane %v1483, %v506
  %v2014 = vperm.slane %v1486, %v506
  %v2015 = vperm.slane %v1489, %v506
  %v2016 = vperm.slane %v1492, %v506
  %v2017 = vperm.slane %v1495, %v506
  %v2018 = vperm.slane %v1498, %v506
  %v2019 = vperm.slane %v1501, %v506
  %v2020 = vperm.slane %v1504, %v506
  %v2021 = vperm.slane %v1507, %v506
  %v2022 = vperm.slane %v1510, %v506
  %v2023 = vperm.slane %v1513, %v506
  %v2024 = vperm.slane %v1516, %v506
  %v2025 = vperm.slane %v1519, %v506
  %v2026 = vperm.slane %v1522, %v506
  %v2027 = vperm.slane %v1525, %v506
  %v2028 = vperm.slane %v1528, %v506
  %v2029 = vperm.slane %v1531, %v506
  %v2030 = vperm.slane %v1534, %v506
  %v2031 = vperm.slane %v1537, %v506
  %v2032 = vperm.slane %v1540, %v506
  %v2033 = vperm.slane %v1543, %v506
  %v2034 = vperm.slane %v1546, %v506
  %v2035 = vperm.slane %v1549, %v506
  %v2036 = vperm.slane %v1552, %v506
  %v2037 = vperm.slane %v1555, %v506
  %v2038 = vperm.slane %v1558, %v506
  %v2039 = vperm.slane %v1561, %v506
  %v2040 = vperm.slane %v1564, %v506
  %v2041 = vperm.slane %v1567, %v506
  %v2042 = vperm.slane %v1570, %v506
  %v2043 = vperm.slane %v1573, %v506
  %v2044 = vperm.slane %v1576, %v506
  %v2045 = vperm.slane %v1579, %v506
  %v2046 = vperm.slane %v1582, %v506
  %v2047 = vperm.slane %v1585, %v506
  %v2048 = vperm.slane %v1588, %v506
  %v2049 = vperm.slane %v1591, %v506
  %v2050 = vperm.slane %v1594, %v506
  %v2051 = vperm.slane %v1597, %v506
  %v2052 = vperm.slane %v1600, %v506
  %v2053 = vperm.slane %v1603, %v506
  %v2054 = vperm.slane %v1606, %v506
  %v2055 = vperm.slane %v1609, %v506
  %v2056 = vperm.slane %v1612, %v506
  %v2057 = vperm.slane %v1615, %v506
  %v2058 = vperm.slane %v1618, %v506
  %v2059 = vperm.slane %v1621, %v506
  %v2060 = vperm.slane %v1624, %v506
  %v2061 = vperm.slane %v1627, %v506
  %v2062 = vperm.slane %v1630, %v506
  %v2063 = vperm.slane %v1633, %v506
  %v2064 = vperm.slane %v1636, %v506
  %v2065 = vperm.slane %v1639, %v506
  %v2066 = vperm.slane %v1642, %v506
  %v2067 = vperm.slane %v1645, %v506
  %v2068 = vperm.slane %v1648, %v506
  %v2069 = vperm.slane %v1651, %v506
  %v2070 = vperm.slane %v1654, %v506
  %v2071 = vperm.slane %v1657, %v506
  %v2072 = vperm.slane %v1660, %v506
  %v2073 = vperm.slane %v1663, %v506
  %v2074 = vperm.slane %v1666, %v506
  %v2075 = vperm.slane %v1669, %v506
  %v2076 = vperm.slane %v1672, %v506
  %v2077 = vperm.slane %v1675, %v506
  %v2078 = vperm.slane %v1678, %v506
  %v2079 = vperm.slane %v1681, %v506
  %v2080 = vperm.slane %v1684, %v506
  %v2081 = vperm.slane %v1687, %v506
  %v2082 = vperm.slane %v1690, %v506
  %v2083 = vperm.slane %v1693, %v506
  %v2084 = vperm.slane %v1696, %v506
  %v2085 = vperm.slane %v1699, %v506
  %v2086 = vperm.slane %v1702, %v506
  %v2087 = vperm.slane %v1705, %v506
  %v2088 = vperm.slane %v1708, %v506
  %v2089 = vperm.slane %v1711, %v506
  %v2090 = vperm.slane %v1714, %v506
  %v2091 = vperm.slane %v1717, %v506
  %v2092 = vperm.slane %v1720, %v506
  %v2093 = vperm.slane %v1723, %v506
  %v2094 = vperm.slane %v1726, %v506
  %v2095 = vperm.slane %v1729, %v506
  %v2096 = vperm.slane %v1732, %v506
  %v2097 = vperm.slane %v1735, %v506
  %v2098 = vperm.slane %v1738, %v506
  %v2099 = vperm.slane %v1741, %v506
  %v2100 = vperm.slane %v1744, %v506
  %v2101 = vperm.slane %v1747, %v506
  %v2102 = vperm.slane %v1750, %v506
  %v2103 = vperm.slane %v1753, %v506
  %v2104 = vperm.slane %v1756, %v506
  %v2105 = vperm.slane %v1759, %v506
  %v2106 = vperm.slane %v1762, %v506
  %v2107 = vperm.slane %v1765, %v506
  %v2108 = vperm.slane %v1768, %v506
  %v2109 = vperm.slane %v1771, %v506
  %v2110 = vperm.slane %v1774, %v506
  %v2111 = vperm.slane %v1777, %v506
  %v2112 = vperm.slane %v1780, %v506
  %v2113 = vperm.slane %v1783, %v506
  %v2114 = vperm.slane %v1786, %v506
  %v2115 = vperm.slane %v1789, %v506
  %v2116 = vperm.slane %v1792, %v506
  %v2117 = vperm.slane %v1795, %v506
  %v2118 = vperm.slane %v1798, %v506
  %v2119 = vperm.slane %v1801, %v506
  %v2120 = vperm.slane %v1804, %v506
  %v2121 = vperm.slane %v1807, %v506
  %v2122 = vperm.slane %v1810, %v506
  %v2123 = vperm.slane %v1813, %v506
  %v2124 = vperm.slane %v1816, %v506
  %v2125 = vperm.slane %v1819, %v506
  %v2126 = vperm.slane %v1822, %v506
  %v2127 = vperm.slane %v1825, %v506
  %v2128 = vperm.slane %v1828, %v506
  %v2129 = vperm.slane %v1831, %v506
  %v2130 = vperm.slane %v1834, %v506
  %v2131 = vperm.slane %v1837, %v506
  %v2132 = vperm.slane %v1840, %v506
  %v2133 = vperm.slane %v1843, %v506
  %v2134 = vperm.slane %v1846, %v506
  %v2135 = vperm.slane %v1849, %v506
  %v2136 = vperm.slane %v1852, %v506
  %v2137 = vperm.slane %v1855, %v506
  %v2138 = vperm.slane %v1858, %v506
  %v2139 = vperm.slane %v1861, %v506
  %v2140 = vperm.slane %v1864, %v506
  %v2141 = vperm.slane %v1867, %v506
  %v2142 = vperm.slane %v1870, %v506
  %v2143 = vperm.slane %v1873, %v506
  %v2144 = vperm.slane %v1876, %v506
  %v2145 = vperm.slane %v1879, %v506
  %v2146 = vperm.slane %v1882, %v506
  %v2147 = vperm.slane %v1885, %v506
  %v2148 = vperm.slane %v1888, %v506
  %v2149 = vperm.slane %v1891, %v506
  %v2150 = vperm.slane %v1894, %v506
  %v2151 = vperm.slane %v1897, %v506
  %v2152 = vperm.slane %v1900, %v506
  %v2153 = vperm.slane %v1903, %v506
  %v2154 = vperm.slane %v1906, %v506
  %v2155 = vperm.slane %v1909, %v506
  %v2156 = vperm.slane %v1912, %v506
  %v2157 = vperm.slane %v1915, %v506
  %v2158 = vperm.slane %v1918, %v506
  %v2159 = vperm.slane %v1921, %v506
  %v2160 = vperm.slane %v1924, %v506
  %v2161 = vperm.slane %v1927, %v506
  %v2162 = vperm.slane %v1930, %v506
  %v2163 = vperm.slane %v1933, %v506
  %v2164 = vperm.slane %v1936, %v506
  %v2165 = vperm.slane %v1939, %v506
  %v2166 = vperm.slane %v1942, %v506
  %v2167 = vperm.slane %v1945, %v506
  %v2168 = vperm.slane %v1948, %v506
  %v2169 = vperm.slane %v1951, %v506
  %v2170 = vperm.slane %v1954, %v506
  %v2171 = vperm.slane %v1957, %v506
  %v2172 = vperm.slane %v1960, %v506
  %v2173 = vperm.slane %v1963, %v506
  %v2174 = vperm.slane %v1966, %v506
  %v2175 = vperm.slane %v1969, %v506
  %v2176 = vperm.slane %v1972, %v506
  %v2177 = vperm.slane %v1975, %v506
  %v2178 = vperm.slane %v1978, %v506
  %v2179 = vperm.slane %v1981, %v506
  %v2180 = vperm.slane %v1984, %v506
  %v2181 = vperm.slane %v1987, %v506
  %v2182 = vperm.slane %v1990, %v506
  %v2183 = vsel %vm605, %v1992, %v1991
  %vm2184 = vcmask 1042434
  %v2185 = vsel %vm2184, %v1993, %v2183
  %vm2186 = vcmask 1043459
  %v2187 = vsel %vm2186, %v1994, %v2185
  %vm2188 = vcmask 1044484
  %v2189 = vsel %vm2188, %v1995, %v2187
  %vm2190 = vcmask 1045509
  %v2191 = vsel %vm2190, %v1996, %v2189
  %vm2192 = vcmask 1046534
  %v2193 = vsel %vm2192, %v1997, %v2191
  %vm2194 = vcmask 1047559
  %v2195 = vsel %vm2194, %v1998, %v2193
  %v2196 = vsel %vm605, %v2000, %v1999
  %v2197 = vsel %vm2184, %v2001, %v2196
  %v2198 = vsel %vm2186, %v2002, %v2197
  %v2199 = vsel %vm2188, %v2003, %v2198
  %v2200 = vsel %vm2190, %v2004, %v2199
  %v2201 = vsel %vm2192, %v2005, %v2200
  %v2202 = vsel %vm2194, %v2006, %v2201
  %v2203 = vsel %vm605, %v2008, %v2007
  %v2204 = vsel %vm2184, %v2009, %v2203
  %v2205 = vsel %vm2186, %v2010, %v2204
  %v2206 = vsel %vm2188, %v2011, %v2205
  %v2207 = vsel %vm2190, %v2012, %v2206
  %v2208 = vsel %vm2192, %v2013, %v2207
  %v2209 = vsel %vm2194, %v2014, %v2208
  %v2210 = vsel %vm605, %v2016, %v2015
  %v2211 = vsel %vm2184, %v2017, %v2210
  %v2212 = vsel %vm2186, %v2018, %v2211
  %v2213 = vsel %vm2188, %v2019, %v2212
  %v2214 = vsel %vm2190, %v2020, %v2213
  %v2215 = vsel %vm2192, %v2021, %v2214
  %v2216 = vsel %vm2194, %v2022, %v2215
  %v2217 = vsel %vm605, %v2024, %v2023
  %v2218 = vsel %vm2184, %v2025, %v2217
  %v2219 = vsel %vm2186, %v2026, %v2218
  %v2220 = vsel %vm2188, %v2027, %v2219
  %v2221 = vsel %vm2190, %v2028, %v2220
  %v2222 = vsel %vm2192, %v2029, %v2221
  %v2223 = vsel %vm2194, %v2030, %v2222
  %v2224 = vsel %vm605, %v2032, %v2031
  %v2225 = vsel %vm2184, %v2033, %v2224
  %v2226 = vsel %vm2186, %v2034, %v2225
  %v2227 = vsel %vm2188, %v2035, %v2226
  %v2228 = vsel %vm2190, %v2036, %v2227
  %v2229 = vsel %vm2192, %v2037, %v2228
  %v2230 = vsel %vm2194, %v2038, %v2229
  %v2231 = vsel %vm605, %v2040, %v2039
  %v2232 = vsel %vm2184, %v2041, %v2231
  %v2233 = vsel %vm2186, %v2042, %v2232
  %v2234 = vsel %vm2188, %v2043, %v2233
  %v2235 = vsel %vm2190, %v2044, %v2234
  %v2236 = vsel %vm2192, %v2045, %v2235
  %v2237 = vsel %vm2194, %v2046, %v2236
  %v2238 = vsel %vm605, %v2048, %v2047
  %v2239 = vsel %vm2184, %v2049, %v2238
  %v2240 = vsel %vm2186, %v2050, %v2239
  %v2241 = vsel %vm2188, %v2051, %v2240
  %v2242 = vsel %vm2190, %v2052, %v2241
  %v2243 = vsel %vm2192, %v2053, %v2242
  %v2244 = vsel %vm2194, %v2054, %v2243
  %v2245 = vsel %vm605, %v2056, %v2055
  %v2246 = vsel %vm2184, %v2057, %v2245
  %v2247 = vsel %vm2186, %v2058, %v2246
  %v2248 = vsel %vm2188, %v2059, %v2247
  %v2249 = vsel %vm2190, %v2060, %v2248
  %v2250 = vsel %vm2192, %v2061, %v2249
  %v2251 = vsel %vm2194, %v2062, %v2250
  %v2252 = vsel %vm605, %v2064, %v2063
  %v2253 = vsel %vm2184, %v2065, %v2252
  %v2254 = vsel %vm2186, %v2066, %v2253
  %v2255 = vsel %vm2188, %v2067, %v2254
  %v2256 = vsel %vm2190, %v2068, %v2255
  %v2257 = vsel %vm2192, %v2069, %v2256
  %v2258 = vsel %vm2194, %v2070, %v2257
  %v2259 = vsel %vm605, %v2072, %v2071
  %v2260 = vsel %vm2184, %v2073, %v2259
  %v2261 = vsel %vm2186, %v2074, %v2260
  %v2262 = vsel %vm2188, %v2075, %v2261
  %v2263 = vsel %vm2190, %v2076, %v2262
  %v2264 = vsel %vm2192, %v2077, %v2263
  %v2265 = vsel %vm2194, %v2078, %v2264
  %v2266 = vsel %vm605, %v2080, %v2079
  %v2267 = vsel %vm2184, %v2081, %v2266
  %v2268 = vsel %vm2186, %v2082, %v2267
  %v2269 = vsel %vm2188, %v2083, %v2268
  %v2270 = vsel %vm2190, %v2084, %v2269
  %v2271 = vsel %vm2192, %v2085, %v2270
  %v2272 = vsel %vm2194, %v2086, %v2271
  %v2273 = vsel %vm605, %v2088, %v2087
  %v2274 = vsel %vm2184, %v2089, %v2273
  %v2275 = vsel %vm2186, %v2090, %v2274
  %v2276 = vsel %vm2188, %v2091, %v2275
  %v2277 = vsel %vm2190, %v2092, %v2276
  %v2278 = vsel %vm2192, %v2093, %v2277
  %v2279 = vsel %vm2194, %v2094, %v2278
  %v2280 = vsel %vm605, %v2096, %v2095
  %v2281 = vsel %vm2184, %v2097, %v2280
  %v2282 = vsel %vm2186, %v2098, %v2281
  %v2283 = vsel %vm2188, %v2099, %v2282
  %v2284 = vsel %vm2190, %v2100, %v2283
  %v2285 = vsel %vm2192, %v2101, %v2284
  %v2286 = vsel %vm2194, %v2102, %v2285
  %v2287 = vsel %vm605, %v2104, %v2103
  %v2288 = vsel %vm2184, %v2105, %v2287
  %v2289 = vsel %vm2186, %v2106, %v2288
  %v2290 = vsel %vm2188, %v2107, %v2289
  %v2291 = vsel %vm2190, %v2108, %v2290
  %v2292 = vsel %vm2192, %v2109, %v2291
  %v2293 = vsel %vm2194, %v2110, %v2292
  %v2294 = vsel %vm605, %v2112, %v2111
  %v2295 = vsel %vm2184, %v2113, %v2294
  %v2296 = vsel %vm2186, %v2114, %v2295
  %v2297 = vsel %vm2188, %v2115, %v2296
  %v2298 = vsel %vm2190, %v2116, %v2297
  %v2299 = vsel %vm2192, %v2117, %v2298
  %v2300 = vsel %vm2194, %v2118, %v2299
  %v2301 = vsel %vm605, %v2120, %v2119
  %v2302 = vsel %vm2184, %v2121, %v2301
  %v2303 = vsel %vm2186, %v2122, %v2302
  %v2304 = vsel %vm2188, %v2123, %v2303
  %v2305 = vsel %vm2190, %v2124, %v2304
  %v2306 = vsel %vm2192, %v2125, %v2305
  %v2307 = vsel %vm2194, %v2126, %v2306
  %v2308 = vsel %vm605, %v2128, %v2127
  %v2309 = vsel %vm2184, %v2129, %v2308
  %v2310 = vsel %vm2186, %v2130, %v2309
  %v2311 = vsel %vm2188, %v2131, %v2310
  %v2312 = vsel %vm2190, %v2132, %v2311
  %v2313 = vsel %vm2192, %v2133, %v2312
  %v2314 = vsel %vm2194, %v2134, %v2313
  %v2315 = vsel %vm605, %v2136, %v2135
  %v2316 = vsel %vm2184, %v2137, %v2315
  %v2317 = vsel %vm2186, %v2138, %v2316
  %v2318 = vsel %vm2188, %v2139, %v2317
  %v2319 = vsel %vm2190, %v2140, %v2318
  %v2320 = vsel %vm2192, %v2141, %v2319
  %v2321 = vsel %vm2194, %v2142, %v2320
  %v2322 = vsel %vm605, %v2144, %v2143
  %v2323 = vsel %vm2184, %v2145, %v2322
  %v2324 = vsel %vm2186, %v2146, %v2323
  %v2325 = vsel %vm2188, %v2147, %v2324
  %v2326 = vsel %vm2190, %v2148, %v2325
  %v2327 = vsel %vm2192, %v2149, %v2326
  %v2328 = vsel %vm2194, %v2150, %v2327
  %v2329 = vsel %vm605, %v2152, %v2151
  %v2330 = vsel %vm2184, %v2153, %v2329
  %v2331 = vsel %vm2186, %v2154, %v2330
  %v2332 = vsel %vm2188, %v2155, %v2331
  %v2333 = vsel %vm2190, %v2156, %v2332
  %v2334 = vsel %vm2192, %v2157, %v2333
  %v2335 = vsel %vm2194, %v2158, %v2334
  %v2336 = vsel %vm605, %v2160, %v2159
  %v2337 = vsel %vm2184, %v2161, %v2336
  %v2338 = vsel %vm2186, %v2162, %v2337
  %v2339 = vsel %vm2188, %v2163, %v2338
  %v2340 = vsel %vm2190, %v2164, %v2339
  %v2341 = vsel %vm2192, %v2165, %v2340
  %v2342 = vsel %vm2194, %v2166, %v2341
  %v2343 = vsel %vm605, %v2168, %v2167
  %v2344 = vsel %vm2184, %v2169, %v2343
  %v2345 = vsel %vm2186, %v2170, %v2344
  %v2346 = vsel %vm2188, %v2171, %v2345
  %v2347 = vsel %vm2190, %v2172, %v2346
  %v2348 = vsel %vm2192, %v2173, %v2347
  %v2349 = vsel %vm2194, %v2174, %v2348
  %v2350 = vsel %vm605, %v2176, %v2175
  %v2351 = vsel %vm2184, %v2177, %v2350
  %v2352 = vsel %vm2186, %v2178, %v2351
  %v2353 = vsel %vm2188, %v2179, %v2352
  %v2354 = vsel %vm2190, %v2180, %v2353
  %v2355 = vsel %vm2192, %v2181, %v2354
  %v2356 = vsel %vm2194, %v2182, %v2355
  %vm2381 = vcmask 15360
  %v2382 = vsel %vm2381, %v2195, 0.0
  %2383 = vadd.xlane.f32.xlu0 %v2382
  %v2384 = vpop.xlane.xlu0 %2383
  %v2385 = vsel %vm2381, %v2202, 0.0
  %2386 = vadd.xlane.f32.xlu0 %v2385
  %v2387 = vpop.xlane.xlu0 %2386
  %v2388 = vsel %vm2381, %v2209, 0.0
  %2389 = vadd.xlane.f32.xlu0 %v2388
  %v2390 = vpop.xlane.xlu0 %2389
  %v2391 = vsel %vm2381, %v2216, 0.0
  %2392 = vadd.xlane.f32.xlu0 %v2391
  %v2393 = vpop.xlane.xlu0 %2392
  %v2394 = vsel %vm2381, %v2223, 0.0
  %2395 = vadd.xlane.f32.xlu0 %v2394
  %v2396 = vpop.xlane.xlu0 %2395
  %v2397 = vsel %vm2381, %v2230, 0.0
  %2398 = vadd.xlane.f32.xlu0 %v2397
  %v2399 = vpop.xlane.xlu0 %2398
  %v2400 = vsel %vm2381, %v2237, 0.0
  %2401 = vadd.xlane.f32.xlu0 %v2400
  %v2402 = vpop.xlane.xlu0 %2401
  %v2403 = vsel %vm2381, %v2244, 0.0
  %2404 = vadd.xlane.f32.xlu0 %v2403
  %v2405 = vpop.xlane.xlu0 %2404
  %v2406 = vsel %vm2381, %v2251, 0.0
  %2407 = vadd.xlane.f32.xlu0 %v2406
  %v2408 = vpop.xlane.xlu0 %2407
  %v2409 = vsel %vm2381, %v2258, 0.0
  %2410 = vadd.xlane.f32.xlu0 %v2409
  %v2411 = vpop.xlane.xlu0 %2410
  %v2412 = vsel %vm2381, %v2265, 0.0
  %2413 = vadd.xlane.f32.xlu0 %v2412
  %v2414 = vpop.xlane.xlu0 %2413
  %v2415 = vsel %vm2381, %v2272, 0.0
  %2416 = vadd.xlane.f32.xlu0 %v2415
  %v2417 = vpop.xlane.xlu0 %2416
  %v2418 = vsel %vm2381, %v2279, 0.0
  %2419 = vadd.xlane.f32.xlu0 %v2418
  %v2420 = vpop.xlane.xlu0 %2419
  %v2421 = vsel %vm2381, %v2286, 0.0
  %2422 = vadd.xlane.f32.xlu0 %v2421
  %v2423 = vpop.xlane.xlu0 %2422
  %v2424 = vsel %vm2381, %v2293, 0.0
  %2425 = vadd.xlane.f32.xlu0 %v2424
  %v2426 = vpop.xlane.xlu0 %2425
  %v2427 = vsel %vm2381, %v2300, 0.0
  %2428 = vadd.xlane.f32.xlu0 %v2427
  %v2429 = vpop.xlane.xlu0 %2428
  %v2430 = vsel %vm2381, %v2307, 0.0
  %2431 = vadd.xlane.f32.xlu0 %v2430
  %v2432 = vpop.xlane.xlu0 %2431
  %v2433 = vsel %vm2381, %v2314, 0.0
  %2434 = vadd.xlane.f32.xlu0 %v2433
  %v2435 = vpop.xlane.xlu0 %2434
  %v2436 = vsel %vm2381, %v2321, 0.0
  %2437 = vadd.xlane.f32.xlu0 %v2436
  %v2438 = vpop.xlane.xlu0 %2437
  %v2439 = vsel %vm2381, %v2328, 0.0
  %2440 = vadd.xlane.f32.xlu0 %v2439
  %v2441 = vpop.xlane.xlu0 %2440
  %v2442 = vsel %vm2381, %v2335, 0.0
  %2443 = vadd.xlane.f32.xlu0 %v2442
  %v2444 = vpop.xlane.xlu0 %2443
  %v2445 = vsel %vm2381, %v2342, 0.0
  %2446 = vadd.xlane.f32.xlu0 %v2445
  %v2447 = vpop.xlane.xlu0 %2446
  %v2448 = vsel %vm2381, %v2349, 0.0
  %2449 = vadd.xlane.f32.xlu0 %v2448
  %v2450 = vpop.xlane.xlu0 %2449
  %v2451 = vsel %vm2381, %v2356, 0.0
  %2452 = vadd.xlane.f32.xlu0 %v2451
  %v2453 = vpop.xlane.xlu0 %2452
  %v2454 = vld [vmem:[%s4] sm:$0xff]
  %v2455 = vld [vmem:[%s4 + $0x8] sm:$0xff]
  %v2456 = vld [vmem:[%s4 + $0x10] sm:$0xff]
  %v2457 = vld [vmem:[%s4 + $0x18] sm:$0xff]
  %v2458 = vld [vmem:[%s4 + $0x20] sm:$0xff]
  %v2459 = vld [vmem:[%s4 + $0x28] sm:$0xff]
  %v2460 = vadd.f32 %v2384, %v2454
  %v2461 = vadd.f32 %v2387, %v2455
  %v2462 = vadd.f32 %v2390, %v2456
  %v2463 = vadd.f32 %v2393, %v2457
  %v2464 = vadd.f32 %v2396, %v2458
  %v2465 = vadd.f32 %v2399, %v2459
  %v2466 = vadd.f32 %v2402, %v2454
  %v2467 = vadd.f32 %v2405, %v2455
  %v2468 = vadd.f32 %v2408, %v2456
  %v2469 = vadd.f32 %v2411, %v2457
  %v2470 = vadd.f32 %v2414, %v2458
  %v2471 = vadd.f32 %v2417, %v2459
  %v2472 = vadd.f32 %v2420, %v2454
  %v2473 = vadd.f32 %v2423, %v2455
  %v2474 = vadd.f32 %v2426, %v2456
  %v2475 = vadd.f32 %v2429, %v2457
  %v2476 = vadd.f32 %v2432, %v2458
  %v2477 = vadd.f32 %v2435, %v2459
  %v2478 = vadd.f32 %v2438, %v2454
  %v2479 = vadd.f32 %v2441, %v2455
  %v2480 = vadd.f32 %v2444, %v2456
  %v2481 = vadd.f32 %v2447, %v2457
  %v2482 = vadd.f32 %v2450, %v2458
  %v2483 = vadd.f32 %v2453, %v2459
  %v2484 = vmax.f32 %v2460, 0.0
  %v2485 = vmax.f32 %v2461, 0.0
  %v2486 = vmax.f32 %v2462, 0.0
  %v2487 = vmax.f32 %v2463, 0.0
  %v2488 = vmax.f32 %v2464, 0.0
  %v2489 = vmax.f32 %v2465, 0.0
  %v2490 = vmax.f32 %v2466, 0.0
  %v2491 = vmax.f32 %v2467, 0.0
  %v2492 = vmax.f32 %v2468, 0.0
  %v2493 = vmax.f32 %v2469, 0.0
  %v2494 = vmax.f32 %v2470, 0.0
  %v2495 = vmax.f32 %v2471, 0.0
  %v2496 = vmax.f32 %v2472, 0.0
  %v2497 = vmax.f32 %v2473, 0.0
  %v2498 = vmax.f32 %v2474, 0.0
  %v2499 = vmax.f32 %v2475, 0.0
  %v2500 = vmax.f32 %v2476, 0.0
  %v2501 = vmax.f32 %v2477, 0.0
  %v2502 = vmax.f32 %v2478, 0.0
  %v2503 = vmax.f32 %v2479, 0.0
  %v2504 = vmax.f32 %v2480, 0.0
  %v2505 = vmax.f32 %v2481, 0.0
  %v2506 = vmax.f32 %v2482, 0.0
  %v2507 = vmax.f32 %v2483, 0.0
  %v2508 = vxor.u32 %v2484, 2147483648
  %v2509 = vxor.u32 %v2485, 2147483648
  %v2510 = vxor.u32 %v2486, 2147483648
  %v2511 = vxor.u32 %v2487, 2147483648
  %v2512 = vxor.u32 %v2488, 2147483648
  %v2513 = vxor.u32 %v2489, 2147483648
  %v2514 = vxor.u32 %v2490, 2147483648
  %v2515 = vxor.u32 %v2491, 2147483648
  %v2516 = vxor.u32 %v2492, 2147483648
  %v2517 = vxor.u32 %v2493, 2147483648
  %v2518 = vxor.u32 %v2494, 2147483648
  %v2519 = vxor.u32 %v2495, 2147483648
  %v2520 = vxor.u32 %v2496, 2147483648
  %v2521 = vxor.u32 %v2497, 2147483648
  %v2522 = vxor.u32 %v2498, 2147483648
  %v2523 = vxor.u32 %v2499, 2147483648
  %v2524 = vxor.u32 %v2500, 2147483648
  %v2525 = vxor.u32 %v2501, 2147483648
  %v2526 = vxor.u32 %v2502, 2147483648
  %v2527 = vxor.u32 %v2503, 2147483648
  %v2528 = vxor.u32 %v2504, 2147483648
  %v2529 = vxor.u32 %v2505, 2147483648
  %v2530 = vxor.u32 %v2506, 2147483648
  %v2531 = vxor.u32 %v2507, 2147483648
  %v2532 = vmul.f32 %v2508, 1.442695
  %v2533 = vpow.pop %v2532
  %v2534 = vmul.f32 %v2509, 1.442695
  %v2535 = vpow.pop %v2534
  %v2536 = vmul.f32 %v2510, 1.442695
  %v2537 = vpow.pop %v2536
  %v2538 = vmul.f32 %v2511, 1.442695
  %v2539 = vpow.pop %v2538
  %v2540 = vmul.f32 %v2512, 1.442695
  %v2541 = vpow.pop %v2540
  %v2542 = vmul.f32 %v2513, 1.442695
  %v2543 = vpow.pop %v2542
  %v2544 = vmul.f32 %v2514, 1.442695
  %v2545 = vpow.pop %v2544
  %v2546 = vmul.f32 %v2515, 1.442695
  %v2547 = vpow.pop %v2546
  %v2548 = vmul.f32 %v2516, 1.442695
  %v2549 = vpow.pop %v2548
  %v2550 = vmul.f32 %v2517, 1.442695
  %v2551 = vpow.pop %v2550
  %v2552 = vmul.f32 %v2518, 1.442695
  %v2553 = vpow.pop %v2552
  %v2554 = vmul.f32 %v2519, 1.442695
  %v2555 = vpow.pop %v2554
  %v2556 = vmul.f32 %v2520, 1.442695
  %v2557 = vpow.pop %v2556
  %v2558 = vmul.f32 %v2521, 1.442695
  %v2559 = vpow.pop %v2558
  %v2560 = vmul.f32 %v2522, 1.442695
  %v2561 = vpow.pop %v2560
  %v2562 = vmul.f32 %v2523, 1.442695
  %v2563 = vpow.pop %v2562
  %v2564 = vmul.f32 %v2524, 1.442695
  %v2565 = vpow.pop %v2564
  %v2566 = vmul.f32 %v2525, 1.442695
  %v2567 = vpow.pop %v2566
  %v2568 = vmul.f32 %v2526, 1.442695
  %v2569 = vpow.pop %v2568
  %v2570 = vmul.f32 %v2527, 1.442695
  %v2571 = vpow.pop %v2570
  %v2572 = vmul.f32 %v2528, 1.442695
  %v2573 = vpow.pop %v2572
  %v2574 = vmul.f32 %v2529, 1.442695
  %v2575 = vpow.pop %v2574
  %v2576 = vmul.f32 %v2530, 1.442695
  %v2577 = vpow.pop %v2576
  %v2578 = vmul.f32 %v2531, 1.442695
  %v2579 = vpow.pop %v2578
  %v2580 = vadd.f32 %v2533, 1.0
  %v2581 = vadd.f32 %v2535, 1.0
  %v2582 = vadd.f32 %v2537, 1.0
  %v2583 = vadd.f32 %v2539, 1.0
  %v2584 = vadd.f32 %v2541, 1.0
  %v2585 = vadd.f32 %v2543, 1.0
  %v2586 = vadd.f32 %v2545, 1.0
  %v2587 = vadd.f32 %v2547, 1.0
  %v2588 = vadd.f32 %v2549, 1.0
  %v2589 = vadd.f32 %v2551, 1.0
  %v2590 = vadd.f32 %v2553, 1.0
  %v2591 = vadd.f32 %v2555, 1.0
  %v2592 = vadd.f32 %v2557, 1.0
  %v2593 = vadd.f32 %v2559, 1.0
  %v2594 = vadd.f32 %v2561, 1.0
  %v2595 = vadd.f32 %v2563, 1.0
  %v2596 = vadd.f32 %v2565, 1.0
  %v2597 = vadd.f32 %v2567, 1.0
  %v2598 = vadd.f32 %v2569, 1.0
  %v2599 = vadd.f32 %v2571, 1.0
  %v2600 = vadd.f32 %v2573, 1.0
  %v2601 = vadd.f32 %v2575, 1.0
  %v2602 = vadd.f32 %v2577, 1.0
  %v2603 = vadd.f32 %v2579, 1.0
  %v2604 = vrcp.pop %v2580
  %v2605 = vmul.f32 %v2580, %v2604
  %v2606 = vsub.f32 1.0, %v2605
  %v2607 = vmul.f32 %v2604, %v2606
  %v2608 = vadd.f32 %v2604, %v2607
  %vm2609 = vweird.f32 %v2580
  %vm2610 = vweird.f32 %v2604
  %vm2611 = vmor %vm2609, %vm2610
  %v2612 = vsel %vm2611, %v2604, %v2608
  %v2613 = vand.u32 2147483647, %v2580
  %vm2614 = vcmp.eq.f32.partialorder %v2613, 8.507059e+37
  %v2615 = vand.u32 %v2580, 2147483648
  %v2616 = vor.u32 1.1754944e-38, %v2615
  %v2617 = vsel %vm2614, %v2616, %v2612
  %v2618 = vmul.f32 1.0, %v2617
  %v2619 = vrcp.pop %v2581
  %v2620 = vmul.f32 %v2581, %v2619
  %v2621 = vsub.f32 1.0, %v2620
  %v2622 = vmul.f32 %v2619, %v2621
  %v2623 = vadd.f32 %v2619, %v2622
  %vm2624 = vweird.f32 %v2581
  %vm2625 = vweird.f32 %v2619
  %vm2626 = vmor %vm2624, %vm2625
  %v2627 = vsel %vm2626, %v2619, %v2623
  %v2628 = vand.u32 2147483647, %v2581
  %vm2629 = vcmp.eq.f32.partialorder %v2628, 8.507059e+37
  %v2630 = vand.u32 %v2581, 2147483648
  %v2631 = vor.u32 1.1754944e-38, %v2630
  %v2632 = vsel %vm2629, %v2631, %v2627
  %v2633 = vmul.f32 1.0, %v2632
  %v2634 = vrcp.pop %v2582
  %v2635 = vmul.f32 %v2582, %v2634
  %v2636 = vsub.f32 1.0, %v2635
  %v2637 = vmul.f32 %v2634, %v2636
  %v2638 = vadd.f32 %v2634, %v2637
  %vm2639 = vweird.f32 %v2582
  %vm2640 = vweird.f32 %v2634
  %vm2641 = vmor %vm2639, %vm2640
  %v2642 = vsel %vm2641, %v2634, %v2638
  %v2643 = vand.u32 2147483647, %v2582
  %vm2644 = vcmp.eq.f32.partialorder %v2643, 8.507059e+37
  %v2645 = vand.u32 %v2582, 2147483648
  %v2646 = vor.u32 1.1754944e-38, %v2645
  %v2647 = vsel %vm2644, %v2646, %v2642
  %v2648 = vmul.f32 1.0, %v2647
  %v2649 = vrcp.pop %v2583
  %v2650 = vmul.f32 %v2583, %v2649
  %v2651 = vsub.f32 1.0, %v2650
  %v2652 = vmul.f32 %v2649, %v2651
  %v2653 = vadd.f32 %v2649, %v2652
  %vm2654 = vweird.f32 %v2583
  %vm2655 = vweird.f32 %v2649
  %vm2656 = vmor %vm2654, %vm2655
  %v2657 = vsel %vm2656, %v2649, %v2653
  %v2658 = vand.u32 2147483647, %v2583
  %vm2659 = vcmp.eq.f32.partialorder %v2658, 8.507059e+37
  %v2660 = vand.u32 %v2583, 2147483648
  %v2661 = vor.u32 1.1754944e-38, %v2660
  %v2662 = vsel %vm2659, %v2661, %v2657
  %v2663 = vmul.f32 1.0, %v2662
  %v2664 = vrcp.pop %v2584
  %v2665 = vmul.f32 %v2584, %v2664
  %v2666 = vsub.f32 1.0, %v2665
  %v2667 = vmul.f32 %v2664, %v2666
  %v2668 = vadd.f32 %v2664, %v2667
  %vm2669 = vweird.f32 %v2584
  %vm2670 = vweird.f32 %v2664
  %vm2671 = vmor %vm2669, %vm2670
  %v2672 = vsel %vm2671, %v2664, %v2668
  %v2673 = vand.u32 2147483647, %v2584
  %vm2674 = vcmp.eq.f32.partialorder %v2673, 8.507059e+37
  %v2675 = vand.u32 %v2584, 2147483648
  %v2676 = vor.u32 1.1754944e-38, %v2675
  %v2677 = vsel %vm2674, %v2676, %v2672
  %v2678 = vmul.f32 1.0, %v2677
  %v2679 = vrcp.pop %v2585
  %v2680 = vmul.f32 %v2585, %v2679
  %v2681 = vsub.f32 1.0, %v2680
  %v2682 = vmul.f32 %v2679, %v2681
  %v2683 = vadd.f32 %v2679, %v2682
  %vm2684 = vweird.f32 %v2585
  %vm2685 = vweird.f32 %v2679
  %vm2686 = vmor %vm2684, %vm2685
  %v2687 = vsel %vm2686, %v2679, %v2683
  %v2688 = vand.u32 2147483647, %v2585
  %vm2689 = vcmp.eq.f32.partialorder %v2688, 8.507059e+37
  %v2690 = vand.u32 %v2585, 2147483648
  %v2691 = vor.u32 1.1754944e-38, %v2690
  %v2692 = vsel %vm2689, %v2691, %v2687
  %v2693 = vmul.f32 1.0, %v2692
  %v2694 = vrcp.pop %v2586
  %v2695 = vmul.f32 %v2586, %v2694
  %v2696 = vsub.f32 1.0, %v2695
  %v2697 = vmul.f32 %v2694, %v2696
  %v2698 = vadd.f32 %v2694, %v2697
  %vm2699 = vweird.f32 %v2586
  %vm2700 = vweird.f32 %v2694
  %vm2701 = vmor %vm2699, %vm2700
  %v2702 = vsel %vm2701, %v2694, %v2698
  %v2703 = vand.u32 2147483647, %v2586
  %vm2704 = vcmp.eq.f32.partialorder %v2703, 8.507059e+37
  %v2705 = vand.u32 %v2586, 2147483648
  %v2706 = vor.u32 1.1754944e-38, %v2705
  %v2707 = vsel %vm2704, %v2706, %v2702
  %v2708 = vmul.f32 1.0, %v2707
  %v2709 = vrcp.pop %v2587
  %v2710 = vmul.f32 %v2587, %v2709
  %v2711 = vsub.f32 1.0, %v2710
  %v2712 = vmul.f32 %v2709, %v2711
  %v2713 = vadd.f32 %v2709, %v2712
  %vm2714 = vweird.f32 %v2587
  %vm2715 = vweird.f32 %v2709
  %vm2716 = vmor %vm2714, %vm2715
  %v2717 = vsel %vm2716, %v2709, %v2713
  %v2718 = vand.u32 2147483647, %v2587
  %vm2719 = vcmp.eq.f32.partialorder %v2718, 8.507059e+37
  %v2720 = vand.u32 %v2587, 2147483648
  %v2721 = vor.u32 1.1754944e-38, %v2720
  %v2722 = vsel %vm2719, %v2721, %v2717
  %v2723 = vmul.f32 1.0, %v2722
  %v2724 = vrcp.pop %v2588
  %v2725 = vmul.f32 %v2588, %v2724
  %v2726 = vsub.f32 1.0, %v2725
  %v2727 = vmul.f32 %v2724, %v2726
  %v2728 = vadd.f32 %v2724, %v2727
  %vm2729 = vweird.f32 %v2588
  %vm2730 = vweird.f32 %v2724
  %vm2731 = vmor %vm2729, %vm2730
  %v2732 = vsel %vm2731, %v2724, %v2728
  %v2733 = vand.u32 2147483647, %v2588
  %vm2734 = vcmp.eq.f32.partialorder %v2733, 8.507059e+37
  %v2735 = vand.u32 %v2588, 2147483648
  %v2736 = vor.u32 1.1754944e-38, %v2735
  %v2737 = vsel %vm2734, %v2736, %v2732
  %v2738 = vmul.f32 1.0, %v2737
  %v2739 = vrcp.pop %v2589
  %v2740 = vmul.f32 %v2589, %v2739
  %v2741 = vsub.f32 1.0, %v2740
  %v2742 = vmul.f32 %v2739, %v2741
  %v2743 = vadd.f32 %v2739, %v2742
  %vm2744 = vweird.f32 %v2589
  %vm2745 = vweird.f32 %v2739
  %vm2746 = vmor %vm2744, %vm2745
  %v2747 = vsel %vm2746, %v2739, %v2743
  %v2748 = vand.u32 2147483647, %v2589
  %vm2749 = vcmp.eq.f32.partialorder %v2748, 8.507059e+37
  %v2750 = vand.u32 %v2589, 2147483648
  %v2751 = vor.u32 1.1754944e-38, %v2750
  %v2752 = vsel %vm2749, %v2751, %v2747
  %v2753 = vmul.f32 1.0, %v2752
  %v2754 = vrcp.pop %v2590
  %v2755 = vmul.f32 %v2590, %v2754
  %v2756 = vsub.f32 1.0, %v2755
  %v2757 = vmul.f32 %v2754, %v2756
  %v2758 = vadd.f32 %v2754, %v2757
  %vm2759 = vweird.f32 %v2590
  %vm2760 = vweird.f32 %v2754
  %vm2761 = vmor %vm2759, %vm2760
  %v2762 = vsel %vm2761, %v2754, %v2758
  %v2763 = vand.u32 2147483647, %v2590
  %vm2764 = vcmp.eq.f32.partialorder %v2763, 8.507059e+37
  %v2765 = vand.u32 %v2590, 2147483648
  %v2766 = vor.u32 1.1754944e-38, %v2765
  %v2767 = vsel %vm2764, %v2766, %v2762
  %v2768 = vmul.f32 1.0, %v2767
  %v2769 = vrcp.pop %v2591
  %v2770 = vmul.f32 %v2591, %v2769
  %v2771 = vsub.f32 1.0, %v2770
  %v2772 = vmul.f32 %v2769, %v2771
  %v2773 = vadd.f32 %v2769, %v2772
  %vm2774 = vweird.f32 %v2591
  %vm2775 = vweird.f32 %v2769
  %vm2776 = vmor %vm2774, %vm2775
  %v2777 = vsel %vm2776, %v2769, %v2773
  %v2778 = vand.u32 2147483647, %v2591
  %vm2779 = vcmp.eq.f32.partialorder %v2778, 8.507059e+37
  %v2780 = vand.u32 %v2591, 2147483648
  %v2781 = vor.u32 1.1754944e-38, %v2780
  %v2782 = vsel %vm2779, %v2781, %v2777
  %v2783 = vmul.f32 1.0, %v2782
  %v2784 = vrcp.pop %v2592
  %v2785 = vmul.f32 %v2592, %v2784
  %v2786 = vsub.f32 1.0, %v2785
  %v2787 = vmul.f32 %v2784, %v2786
  %v2788 = vadd.f32 %v2784, %v2787
  %vm2789 = vweird.f32 %v2592
  %vm2790 = vweird.f32 %v2784
  %vm2791 = vmor %vm2789, %vm2790
  %v2792 = vsel %vm2791, %v2784, %v2788
  %v2793 = vand.u32 2147483647, %v2592
  %vm2794 = vcmp.eq.f32.partialorder %v2793, 8.507059e+37
  %v2795 = vand.u32 %v2592, 2147483648
  %v2796 = vor.u32 1.1754944e-38, %v2795
  %v2797 = vsel %vm2794, %v2796, %v2792
  %v2798 = vmul.f32 1.0, %v2797
  %v2799 = vrcp.pop %v2593
  %v2800 = vmul.f32 %v2593, %v2799
  %v2801 = vsub.f32 1.0, %v2800
  %v2802 = vmul.f32 %v2799, %v2801
  %v2803 = vadd.f32 %v2799, %v2802
  %vm2804 = vweird.f32 %v2593
  %vm2805 = vweird.f32 %v2799
  %vm2806 = vmor %vm2804, %vm2805
  %v2807 = vsel %vm2806, %v2799, %v2803
  %v2808 = vand.u32 2147483647, %v2593
  %vm2809 = vcmp.eq.f32.partialorder %v2808, 8.507059e+37
  %v2810 = vand.u32 %v2593, 2147483648
  %v2811 = vor.u32 1.1754944e-38, %v2810
  %v2812 = vsel %vm2809, %v2811, %v2807
  %v2813 = vmul.f32 1.0, %v2812
  %v2814 = vrcp.pop %v2594
  %v2815 = vmul.f32 %v2594, %v2814
  %v2816 = vsub.f32 1.0, %v2815
  %v2817 = vmul.f32 %v2814, %v2816
  %v2818 = vadd.f32 %v2814, %v2817
  %vm2819 = vweird.f32 %v2594
  %vm2820 = vweird.f32 %v2814
  %vm2821 = vmor %vm2819, %vm2820
  %v2822 = vsel %vm2821, %v2814, %v2818
  %v2823 = vand.u32 2147483647, %v2594
  %vm2824 = vcmp.eq.f32.partialorder %v2823, 8.507059e+37
  %v2825 = vand.u32 %v2594, 2147483648
  %v2826 = vor.u32 1.1754944e-38, %v2825
  %v2827 = vsel %vm2824, %v2826, %v2822
  %v2828 = vmul.f32 1.0, %v2827
  %v2829 = vrcp.pop %v2595
  %v2830 = vmul.f32 %v2595, %v2829
  %v2831 = vsub.f32 1.0, %v2830
  %v2832 = vmul.f32 %v2829, %v2831
  %v2833 = vadd.f32 %v2829, %v2832
  %vm2834 = vweird.f32 %v2595
  %vm2835 = vweird.f32 %v2829
  %vm2836 = vmor %vm2834, %vm2835
  %v2837 = vsel %vm2836, %v2829, %v2833
  %v2838 = vand.u32 2147483647, %v2595
  %vm2839 = vcmp.eq.f32.partialorder %v2838, 8.507059e+37
  %v2840 = vand.u32 %v2595, 2147483648
  %v2841 = vor.u32 1.1754944e-38, %v2840
  %v2842 = vsel %vm2839, %v2841, %v2837
  %v2843 = vmul.f32 1.0, %v2842
  %v2844 = vrcp.pop %v2596
  %v2845 = vmul.f32 %v2596, %v2844
  %v2846 = vsub.f32 1.0, %v2845
  %v2847 = vmul.f32 %v2844, %v2846
  %v2848 = vadd.f32 %v2844, %v2847
  %vm2849 = vweird.f32 %v2596
  %vm2850 = vweird.f32 %v2844
  %vm2851 = vmor %vm2849, %vm2850
  %v2852 = vsel %vm2851, %v2844, %v2848
  %v2853 = vand.u32 2147483647, %v2596
  %vm2854 = vcmp.eq.f32.partialorder %v2853, 8.507059e+37
  %v2855 = vand.u32 %v2596, 2147483648
  %v2856 = vor.u32 1.1754944e-38, %v2855
  %v2857 = vsel %vm2854, %v2856, %v2852
  %v2858 = vmul.f32 1.0, %v2857
  %v2859 = vrcp.pop %v2597
  %v2860 = vmul.f32 %v2597, %v2859
  %v2861 = vsub.f32 1.0, %v2860
  %v2862 = vmul.f32 %v2859, %v2861
  %v2863 = vadd.f32 %v2859, %v2862
  %vm2864 = vweird.f32 %v2597
  %vm2865 = vweird.f32 %v2859
  %vm2866 = vmor %vm2864, %vm2865
  %v2867 = vsel %vm2866, %v2859, %v2863
  %v2868 = vand.u32 2147483647, %v2597
  %vm2869 = vcmp.eq.f32.partialorder %v2868, 8.507059e+37
  %v2870 = vand.u32 %v2597, 2147483648
  %v2871 = vor.u32 1.1754944e-38, %v2870
  %v2872 = vsel %vm2869, %v2871, %v2867
  %v2873 = vmul.f32 1.0, %v2872
  %v2874 = vrcp.pop %v2598
  %v2875 = vmul.f32 %v2598, %v2874
  %v2876 = vsub.f32 1.0, %v2875
  %v2877 = vmul.f32 %v2874, %v2876
  %v2878 = vadd.f32 %v2874, %v2877
  %vm2879 = vweird.f32 %v2598
  %vm2880 = vweird.f32 %v2874
  %vm2881 = vmor %vm2879, %vm2880
  %v2882 = vsel %vm2881, %v2874, %v2878
  %v2883 = vand.u32 2147483647, %v2598
  %vm2884 = vcmp.eq.f32.partialorder %v2883, 8.507059e+37
  %v2885 = vand.u32 %v2598, 2147483648
  %v2886 = vor.u32 1.1754944e-38, %v2885
  %v2887 = vsel %vm2884, %v2886, %v2882
  %v2888 = vmul.f32 1.0, %v2887
  %v2889 = vrcp.pop %v2599
  %v2890 = vmul.f32 %v2599, %v2889
  %v2891 = vsub.f32 1.0, %v2890
  %v2892 = vmul.f32 %v2889, %v2891
  %v2893 = vadd.f32 %v2889, %v2892
  %vm2894 = vweird.f32 %v2599
  %vm2895 = vweird.f32 %v2889
  %vm2896 = vmor %vm2894, %vm2895
  %v2897 = vsel %vm2896, %v2889, %v2893
  %v2898 = vand.u32 2147483647, %v2599
  %vm2899 = vcmp.eq.f32.partialorder %v2898, 8.507059e+37
  %v2900 = vand.u32 %v2599, 2147483648
  %v2901 = vor.u32 1.1754944e-38, %v2900
  %v2902 = vsel %vm2899, %v2901, %v2897
  %v2903 = vmul.f32 1.0, %v2902
  %v2904 = vrcp.pop %v2600
  %v2905 = vmul.f32 %v2600, %v2904
  %v2906 = vsub.f32 1.0, %v2905
  %v2907 = vmul.f32 %v2904, %v2906
  %v2908 = vadd.f32 %v2904, %v2907
  %vm2909 = vweird.f32 %v2600
  %vm2910 = vweird.f32 %v2904
  %vm2911 = vmor %vm2909, %vm2910
  %v2912 = vsel %vm2911, %v2904, %v2908
  %v2913 = vand.u32 2147483647, %v2600
  %vm2914 = vcmp.eq.f32.partialorder %v2913, 8.507059e+37
  %v2915 = vand.u32 %v2600, 2147483648
  %v2916 = vor.u32 1.1754944e-38, %v2915
  %v2917 = vsel %vm2914, %v2916, %v2912
  %v2918 = vmul.f32 1.0, %v2917
  %v2919 = vrcp.pop %v2601
  %v2920 = vmul.f32 %v2601, %v2919
  %v2921 = vsub.f32 1.0, %v2920
  %v2922 = vmul.f32 %v2919, %v2921
  %v2923 = vadd.f32 %v2919, %v2922
  %vm2924 = vweird.f32 %v2601
  %vm2925 = vweird.f32 %v2919
  %vm2926 = vmor %vm2924, %vm2925
  %v2927 = vsel %vm2926, %v2919, %v2923
  %v2928 = vand.u32 2147483647, %v2601
  %vm2929 = vcmp.eq.f32.partialorder %v2928, 8.507059e+37
  %v2930 = vand.u32 %v2601, 2147483648
  %v2931 = vor.u32 1.1754944e-38, %v2930
  %v2932 = vsel %vm2929, %v2931, %v2927
  %v2933 = vmul.f32 1.0, %v2932
  %v2934 = vrcp.pop %v2602
  %v2935 = vmul.f32 %v2602, %v2934
  %v2936 = vsub.f32 1.0, %v2935
  %v2937 = vmul.f32 %v2934, %v2936
  %v2938 = vadd.f32 %v2934, %v2937
  %vm2939 = vweird.f32 %v2602
  %vm2940 = vweird.f32 %v2934
  %vm2941 = vmor %vm2939, %vm2940
  %v2942 = vsel %vm2941, %v2934, %v2938
  %v2943 = vand.u32 2147483647, %v2602
  %vm2944 = vcmp.eq.f32.partialorder %v2943, 8.507059e+37
  %v2945 = vand.u32 %v2602, 2147483648
  %v2946 = vor.u32 1.1754944e-38, %v2945
  %v2947 = vsel %vm2944, %v2946, %v2942
  %v2948 = vmul.f32 1.0, %v2947
  %v2949 = vrcp.pop %v2603
  %v2950 = vmul.f32 %v2603, %v2949
  %v2951 = vsub.f32 1.0, %v2950
  %v2952 = vmul.f32 %v2949, %v2951
  %v2953 = vadd.f32 %v2949, %v2952
  %vm2954 = vweird.f32 %v2603
  %vm2955 = vweird.f32 %v2949
  %vm2956 = vmor %vm2954, %vm2955
  %v2957 = vsel %vm2956, %v2949, %v2953
  %v2958 = vand.u32 2147483647, %v2603
  %vm2959 = vcmp.eq.f32.partialorder %v2958, 8.507059e+37
  %v2960 = vand.u32 %v2603, 2147483648
  %v2961 = vor.u32 1.1754944e-38, %v2960
  %v2962 = vsel %vm2959, %v2961, %v2957
  %v2963 = vmul.f32 1.0, %v2962
  %2965 = vset.pattern.permute.xlu0 0
  %2966 = vperm.xlu0 %2965, %v2618
  %v2967 = vpop.permute.xlu0 %2966
  %2970 = vset.pattern.permute.xlu0 0
  %2971 = vperm.xlu0 %2970, %v2633
  %v2972 = vpop.permute.xlu0 %2971
  %2975 = vset.pattern.permute.xlu0 0
  %2976 = vperm.xlu0 %2975, %v2648
  %v2977 = vpop.permute.xlu0 %2976
  %2980 = vset.pattern.permute.xlu0 0
  %2981 = vperm.xlu0 %2980, %v2663
  %v2982 = vpop.permute.xlu0 %2981
  %2985 = vset.pattern.permute.xlu0 0
  %2986 = vperm.xlu0 %2985, %v2678
  %v2987 = vpop.permute.xlu0 %2986
  %2990 = vset.pattern.permute.xlu0 0
  %2991 = vperm.xlu0 %2990, %v2693
  %v2992 = vpop.permute.xlu0 %2991
  %2995 = vset.pattern.permute.xlu0 0
  %2996 = vperm.xlu0 %2995, %v2708
  %v2997 = vpop.permute.xlu0 %2996
  %3000 = vset.pattern.permute.xlu0 0
  %3001 = vperm.xlu0 %3000, %v2723
  %v3002 = vpop.permute.xlu0 %3001
  %3005 = vset.pattern.permute.xlu0 0
  %3006 = vperm.xlu0 %3005, %v2738
  %v3007 = vpop.permute.xlu0 %3006
  %3010 = vset.pattern.permute.xlu0 0
  %3011 = vperm.xlu0 %3010, %v2753
  %v3012 = vpop.permute.xlu0 %3011
  %3015 = vset.pattern.permute.xlu0 0
  %3016 = vperm.xlu0 %3015, %v2768
  %v3017 = vpop.permute.xlu0 %3016
  %3020 = vset.pattern.permute.xlu0 0
  %3021 = vperm.xlu0 %3020, %v2783
  %v3022 = vpop.permute.xlu0 %3021
  %3025 = vset.pattern.permute.xlu0 0
  %3026 = vperm.xlu0 %3025, %v2798
  %v3027 = vpop.permute.xlu0 %3026
  %3030 = vset.pattern.permute.xlu0 0
  %3031 = vperm.xlu0 %3030, %v2813
  %v3032 = vpop.permute.xlu0 %3031
  %3035 = vset.pattern.permute.xlu0 0
  %3036 = vperm.xlu0 %3035, %v2828
  %v3037 = vpop.permute.xlu0 %3036
  %3040 = vset.pattern.permute.xlu0 0
  %3041 = vperm.xlu0 %3040, %v2843
  %v3042 = vpop.permute.xlu0 %3041
  %3045 = vset.pattern.permute.xlu0 0
  %3046 = vperm.xlu0 %3045, %v2858
  %v3047 = vpop.permute.xlu0 %3046
  %3050 = vset.pattern.permute.xlu0 0
  %3051 = vperm.xlu0 %3050, %v2873
  %v3052 = vpop.permute.xlu0 %3051
  %3055 = vset.pattern.permute.xlu0 0
  %3056 = vperm.xlu0 %3055, %v2888
  %v3057 = vpop.permute.xlu0 %3056
  %3060 = vset.pattern.permute.xlu0 0
  %3061 = vperm.xlu0 %3060, %v2903
  %v3062 = vpop.permute.xlu0 %3061
  %3065 = vset.pattern.permute.xlu0 0
  %3066 = vperm.xlu0 %3065, %v2918
  %v3067 = vpop.permute.xlu0 %3066
  %3070 = vset.pattern.permute.xlu0 0
  %3071 = vperm.xlu0 %3070, %v2933
  %v3072 = vpop.permute.xlu0 %3071
  %3075 = vset.pattern.permute.xlu0 0
  %3076 = vperm.xlu0 %3075, %v2948
  %v3077 = vpop.permute.xlu0 %3076
  %3080 = vset.pattern.permute.xlu0 0
  %3081 = vperm.xlu0 %3080, %v2963
  %v3082 = vpop.permute.xlu0 %3081
  %v3084 = vmul.f32 %v20, %v2967
  %v3085 = vmul.f32 %v21, %v2967
  %v3086 = vmul.f32 %v22, %v2972
  %v3087 = vmul.f32 %v23, %v2972
  %v3088 = vmul.f32 %v24, %v2977
  %v3089 = vmul.f32 %v25, %v2977
  %v3090 = vmul.f32 %v26, %v2982
  %v3091 = vmul.f32 %v27, %v2982
  %v3092 = vmul.f32 %v28, %v2987
  %v3093 = vmul.f32 %v29, %v2987
  %v3094 = vmul.f32 %v30, %v2992
  %v3095 = vmul.f32 %v31, %v2992
  %v3096 = vmul.f32 %v32, %v2997
  %v3097 = vmul.f32 %v33, %v2997
  %v3098 = vmul.f32 %v34, %v3002
  %v3099 = vmul.f32 %v35, %v3002
  %v3100 = vmul.f32 %v36, %v3007
  %v3101 = vmul.f32 %v37, %v3007
  %v3102 = vmul.f32 %v38, %v3012
  %v3103 = vmul.f32 %v39, %v3012
  %v3104 = vmul.f32 %v40, %v3017
  %v3105 = vmul.f32 %v41, %v3017
  %v3106 = vmul.f32 %v42, %v3022
  %v3107 = vmul.f32 %v43, %v3022
  %v3108 = vmul.f32 %v44, %v3027
  %v3109 = vmul.f32 %v45, %v3027
  %v3110 = vmul.f32 %v46, %v3032
  %v3111 = vmul.f32 %v47, %v3032
  %v3112 = vmul.f32 %v48, %v3037
  %v3113 = vmul.f32 %v49, %v3037
  %v3114 = vmul.f32 %v50, %v3042
  %v3115 = vmul.f32 %v51, %v3042
  %v3116 = vmul.f32 %v52, %v3047
  %v3117 = vmul.f32 %v53, %v3047
  %v3118 = vmul.f32 %v54, %v3052
  %v3119 = vmul.f32 %v55, %v3052
  %v3120 = vmul.f32 %v56, %v3057
  %v3121 = vmul.f32 %v57, %v3057
  %v3122 = vmul.f32 %v58, %v3062
  %v3123 = vmul.f32 %v59, %v3062
  %v3124 = vmul.f32 %v60, %v3067
  %v3125 = vmul.f32 %v61, %v3067
  %v3126 = vmul.f32 %v62, %v3072
  %v3127 = vmul.f32 %v63, %v3072
  %v3128 = vmul.f32 %v64, %v3077
  %v3129 = vmul.f32 %v65, %v3077
  %v3130 = vmul.f32 %v66, %v3082
  %v3131 = vmul.f32 %v67, %v3082
  %3132 = vst [vmem:[%s5] sm:$0xff] %v3084
  %3133 = vst [vmem:[%s5 + $0x8] sm:$0xff] %v3085
  %3134 = vst [vmem:[%s5 + $0x10] sm:$0xff] %v3086
  %3135 = vst [vmem:[%s5 + $0x18] sm:$0xff] %v3087
  %3136 = vst [vmem:[%s5 + $0x20] sm:$0xff] %v3088
  %3137 = vst [vmem:[%s5 + $0x28] sm:$0xff] %v3089
  %3138 = vst [vmem:[%s5 + $0x30] sm:$0xff] %v3090
  %3139 = vst [vmem:[%s5 + $0x38] sm:$0xff] %v3091
  %3140 = vst [vmem:[%s5 + $0x40] sm:$0xff] %v3092
  %3141 = vst [vmem:[%s5 + $0x48] sm:$0xff] %v3093
  %3142 = vst [vmem:[%s5 + $0x50] sm:$0xff] %v3094
  %3143 = vst [vmem:[%s5 + $0x58] sm:$0xff] %v3095
  %3144 = vst [vmem:[%s5 + $0x60] sm:$0xff] %v3096
  %3145 = vst [vmem:[%s5 + $0x68] sm:$0xff] %v3097
  %3146 = vst [vmem:[%s5 + $0x70] sm:$0xff] %v3098
  %3147 = vst [vmem:[%s5 + $0x78] sm:$0xff] %v3099
  %3148 = vst [vmem:[%s5 + $0x80] sm:$0xff] %v3100
  %3149 = vst [vmem:[%s5 + $0x88] sm:$0xff] %v3101
  %3150 = vst [vmem:[%s5 + $0x90] sm:$0xff] %v3102
  %3151 = vst [vmem:[%s5 + $0x98] sm:$0xff] %v3103
  %3152 = vst [vmem:[%s5 + $0xa0] sm:$0xff] %v3104
  %3153 = vst [vmem:[%s5 + $0xa8] sm:$0xff] %v3105
  %3154 = vst [vmem:[%s5 + $0xb0] sm:$0xff] %v3106
  %3155 = vst [vmem:[%s5 + $0xb8] sm:$0xff] %v3107
  %3156 = vst [vmem:[%s5 + $0xc0] sm:$0xff] %v3108
  %3157 = vst [vmem:[%s5 + $0xc8] sm:$0xff] %v3109
  %3158 = vst [vmem:[%s5 + $0xd0] sm:$0xff] %v3110
  %3159 = vst [vmem:[%s5 + $0xd8] sm:$0xff] %v3111
  %3160 = vst [vmem:[%s5 + $0xe0] sm:$0xff] %v3112
  %3161 = vst [vmem:[%s5 + $0xe8] sm:$0xff] %v3113
  %3162 = vst [vmem:[%s5 + $0xf0] sm:$0xff] %v3114
  %3163 = vst [vmem:[%s5 + $0xf8] sm:$0xff] %v3115
  %3164 = vst [vmem:[%s5 + $0x100] sm:$0xff] %v3116
  %3165 = vst [vmem:[%s5 + $0x108] sm:$0xff] %v3117
  %3166 = vst [vmem:[%s5 + $0x110] sm:$0xff] %v3118
  %3167 = vst [vmem:[%s5 + $0x118] sm:$0xff] %v3119
  %3168 = vst [vmem:[%s5 + $0x120] sm:$0xff] %v3120
  %3169 = vst [vmem:[%s5 + $0x128] sm:$0xff] %v3121
  %3170 = vst [vmem:[%s5 + $0x130] sm:$0xff] %v3122
  %3171 = vst [vmem:[%s5 + $0x138] sm:$0xff] %v3123
  %3172 = vst [vmem:[%s5 + $0x140] sm:$0xff] %v3124
  %3173 = vst [vmem:[%s5 + $0x148] sm:$0xff] %v3125
  %3174 = vst [vmem:[%s5 + $0x150] sm:$0xff] %v3126
  %3175 = vst [vmem:[%s5 + $0x158] sm:$0xff] %v3127
  %3176 = vst [vmem:[%s5 + $0x160] sm:$0xff] %v3128
  %3177 = vst [vmem:[%s5 + $0x168] sm:$0xff] %v3129
  %3178 = vst [vmem:[%s5 + $0x170] sm:$0xff] %v3130
  %3179 = vst [vmem:[%s5 + $0x178] sm:$0xff] %v3131
  // Predicated region
  $region22: #{squeeze_excitation.1} parent=0 // pred_check
    _
  $region23: #{squeeze_excitation.1} parent=0 // pred_check_branch
    %3181 = sbr.rel (0) target = $region25
  $region24: #{squeeze_excitation.1} parent=0 // pred_region
    _
  $region25: #{squeeze_excitation.1} parent=0 // pred_fallthru
    _
  // Predicated region
  $region26: #{squeeze_excitation.1} parent=0 // pred_check
    _
  $region27: #{squeeze_excitation.1} parent=0 // pred_check_branch
    %3183 = sbr.rel (0) target = $region29
  $region28: #{squeeze_excitation.1} parent=0 // pred_region
    _
  $region29: #{squeeze_excitation.1} parent=0 // pred_fallthru
    _

</llo_original>
